<compile_context>
chip_gen: v7x
topology: tpu7x:2x2x1
jax: 0.10.0
libtpu: 0.0.40
codegen_flags: <defaults>
</compile_context>

<pallas_src>
import functools

import jax
import jax.numpy as jnp
from jax import lax
from jax.experimental import pallas as pl
from jax.experimental.pallas import tpu as pltpu


def _pick_tile(n, preferred):
    """Largest preferred tile that divides n, else n itself (full extent)."""
    for t in preferred:
        if t <= n and n % t == 0:
            return t
    return n


# ----------------------------------------------------------------------------
# Fused QKV projection kernel:  out = x @ W + b   (bf16 operands, f32 accum,
# bf16 output -- avoids an extra f32 HBM round-trip + cast pass)
# ----------------------------------------------------------------------------
def _linear_kernel(x_ref, w_ref, b_ref, o_ref, acc_ref):
    kk = pl.program_id(2)

    @pl.when(kk == 0)
    def _():
        acc_ref[...] = jnp.zeros_like(acc_ref)

    acc_ref[...] += jnp.dot(x_ref[...], w_ref[...],
                            preferred_element_type=jnp.float32)

    @pl.when(kk == pl.num_programs(2) - 1)
    def _():
        o_ref[...] = (acc_ref[...] + b_ref[...]).astype(o_ref.dtype)


def linear_bf16(x, w, b, *, tm=512, tn=256, tk=512):
    """x: (M, K) bf16, w: (K, N) bf16, b: (1, N) f32 -> (M, N) bf16."""
    M, K = x.shape
    _, N = w.shape
    tm = _pick_tile(M, (tm, 512, 256, 128, 64, 32, 16, 8))
    tn = _pick_tile(N, (tn, 256, 128))
    tk = _pick_tile(K, (tk, 512, 256, 128))
    return pl.pallas_call(
        _linear_kernel,
        out_shape=jax.ShapeDtypeStruct((M, N), jnp.bfloat16),
        grid_spec=pltpu.PrefetchScalarGridSpec(
            num_scalar_prefetch=0,
            grid=(M // tm, N // tn, K // tk),
            in_specs=[
                pl.BlockSpec((tm, tk), lambda i, j, k: (i, k)),
                pl.BlockSpec((tk, tn), lambda i, j, k: (k, j)),
                pl.BlockSpec((1, tn), lambda i, j, k: (0, j)),
            ],
            out_specs=pl.BlockSpec((tm, tn), lambda i, j, k: (i, j)),
            scratch_shapes=[pltpu.VMEM((tm, tn), jnp.float32)],
        ),
        compiler_params=pltpu.CompilerParams(
            dimension_semantics=("parallel", "parallel", "arbitrary"),
            vmem_limit_bytes=48 * 1024 * 1024,
        ),
    )(x, w, b)


# ----------------------------------------------------------------------------
# Flash attention, heads packed in lanes (non-causal, optional key-padding
# bias, no dropout).  Each grid cell handles one batch element and one group
# of G heads; per-head score / softmax work produces small (tq, dh)/(tq, 1)
# results that are assembled into ONE lane-dense (tq, G*Dh) accumulator store
# per kv step.  Scale is pre-folded into Q, so no per-step score multiply.
# ----------------------------------------------------------------------------
def _flash_kernel(*refs, g, dh, has_bias):
    if has_bias:
        q_ref, k_ref, v_ref, bias_ref, o_ref, m_sc, l_sc, acc_sc = refs
    else:
        q_ref, k_ref, v_ref, o_ref, m_sc, l_sc, acc_sc = refs
        bias_ref = None

    kv = pl.program_id(3)
    tq = acc_sc.shape[0]

    @pl.when(kv == 0)
    def _():
        m_sc[...] = jnp.full_like(m_sc, -jnp.inf)
        l_sc[...] = jnp.zeros_like(l_sc)
        acc_sc[...] = jnp.zeros_like(acc_sc)

    if has_bias:
        bias = bias_ref[0]                      # (1, tk) f32 additive key bias

    m_prev = m_sc[...]                          # (tq, g) -- one load per step
    l_prev = l_sc[...]

    m_cols, l_cols, a_cols, pv_cols = [], [], [], []
    # g is small (<= 4 lanes-groups here); per-head (tq, tk) temporaries die at
    # the end of each head iteration, only (tq, dh)/(tq, 1) results survive.
    for h in range(g):
        lo = h * dh
        qh = q_ref[0, :, lo:lo + dh]            # (tq, dh) bf16 (scale folded in)
        kh = k_ref[0, :, lo:lo + dh]            # (tk, dh) bf16
        vh = v_ref[0, :, lo:lo + dh]            # (tk, dh) bf16

        s = lax.dot_general(                    # (tq, tk) f32 on the MXU
            qh, kh, (((1,), (1,)), ((), ())),
            preferred_element_type=jnp.float32)
        if has_bias:
            s = s + bias

        m_prev_h = m_prev[:, h:h + 1]           # (tq, 1)
        m_new_h = jnp.maximum(m_prev_h, s.max(axis=-1, keepdims=True))
        a_h = jnp.exp(m_prev_h - m_new_h)
        p = jnp.exp(s - m_new_h)                # (tq, tk) f32 (EUP)
        l_new_h = a_h * l_prev[:, h:h + 1] + p.sum(axis=-1, keepdims=True)
        pv = jnp.dot(p.astype(vh.dtype), vh, preferred_element_type=jnp.float32)

        m_cols.append(m_new_h)
        l_cols.append(l_new_h)
        a_cols.append(a_h)
        pv_cols.append(pv)

    # Single full-width lane-dense scratch updates per kv step (no masked RMWs).
    alpha_full = jnp.concatenate(
        [jnp.broadcast_to(a, (tq, dh)) for a in a_cols], axis=-1)    # (tq, gd)
    pv_full = jnp.concatenate(pv_cols, axis=-1)                      # (tq, gd)
    acc_sc[...] = alpha_full * acc_sc[...] + pv_full
    m_sc[...] = jnp.concatenate(m_cols, axis=-1)
    l_sc[...] = jnp.concatenate(l_cols, axis=-1)

    @pl.when(kv == pl.num_programs(3) - 1)
    def _():
        inv = pl.reciprocal(l_sc[...], approx=True)                  # (tq, g), EUP
        inv_full = jnp.concatenate(
            [jnp.broadcast_to(inv[:, h:h + 1], (tq, dh)) for h in range(g)],
            axis=-1)
        # f32 output written directly from the kernel (no wrapper cast pass).
        o_ref[0] = (acc_sc[...] * inv_full).astype(o_ref.dtype)


def flash_attention_packed(qkv, bias, num_heads, *, tq=512, tk=512,
                           max_group_lanes=128):
    """qkv: (B, S, 3H) bf16 with columns [q|k|v], heads packed '(h d)', Q
    pre-scaled by 1/sqrt(dh).  bias: optional (B, 1, S) f32 additive key bias
    (0 keep / -1e30 pad).  Returns context (B, S, H) f32, heads packed."""
    B, S, H3 = qkv.shape
    H = H3 // 3
    dh = H // num_heads

    # Head-group size: as many heads as fit in a max_group_lanes-wide slab.
    g = 1
    for d in range(num_heads, 0, -1):
        if num_heads % d == 0 and d * dh <= max(dh, max_group_lanes):
            g = d
            break
    gd = g * dh
    n_groups = num_heads // g
    assert gd % 128 == 0, (
        "head-group width must be a multiple of 128 lanes for this layout")

    tq = _pick_tile(S, (tq, 512, 256, 128))
    tk = _pick_tile(S, (tk, 512, 256, 128))

    has_bias = bias is not None
    kernel = functools.partial(_flash_kernel, g=g, dh=dh, has_bias=has_bias)

    # q / k / v tiles are taken straight from the fused qkv buffer (same array
    # passed three times -> no slice copies in HBM).
    in_specs = [
        pl.BlockSpec((1, tq, gd), lambda b, hg, qi, ki: (b, qi, hg)),
        pl.BlockSpec((1, tk, gd), lambda b, hg, qi, ki: (b, ki, n_groups + hg)),
        pl.BlockSpec((1, tk, gd), lambda b, hg, qi, ki: (b, ki, 2 * n_groups + hg)),
    ]
    args = (qkv, qkv, qkv)
    if has_bias:
        in_specs.append(pl.BlockSpec((1, 1, tk), lambda b, hg, qi, ki: (b, 0, ki)))
        args = args + (bias,)

    return pl.pallas_call(
        kernel,
        out_shape=jax.ShapeDtypeStruct((B, S, H), jnp.float32),
        grid_spec=pltpu.PrefetchScalarGridSpec(
            num_scalar_prefetch=0,
            grid=(B, n_groups, S // tq, S // tk),
            in_specs=in_specs,
            out_specs=pl.BlockSpec((1, tq, gd), lambda b, hg, qi, ki: (b, qi, hg)),
            scratch_shapes=[
                pltpu.VMEM((tq, g), jnp.float32),    # running max (per head)
                pltpu.VMEM((tq, g), jnp.float32),    # running sum (per head)
                pltpu.VMEM((tq, gd), jnp.float32),   # lane-dense accumulator
            ],
        ),
        compiler_params=pltpu.CompilerParams(
            dimension_semantics=("parallel", "parallel", "parallel", "arbitrary"),
            vmem_limit_bytes=48 * 1024 * 1024,
        ),
    )(*args)


# ----------------------------------------------------------------------------
# FlashSelfAttention forward (module wrapper)
# ----------------------------------------------------------------------------
def init_params(key, hidden, num_heads):
    ks = jax.random.split(key, 6)
    std = 0.02
    dh = hidden // num_heads
    scale = 1.0 / (dh ** 0.5)
    wq = std * jax.random.normal(ks[0], (hidden, hidden), jnp.float32)
    wk = std * jax.random.normal(ks[1], (hidden, hidden), jnp.float32)
    wv = std * jax.random.normal(ks[2], (hidden, hidden), jnp.float32)
    bq = std * jax.random.normal(ks[3], (hidden,), jnp.float32)
    bk = std * jax.random.normal(ks[4], (hidden,), jnp.float32)
    bv = std * jax.random.normal(ks[5], (hidden,), jnp.float32)
    return {
        "wq": wq, "wk": wk, "wv": wv, "bq": bq, "bk": bk, "bv": bv,
        # Fused QKV weights precomputed once; the softmax scale 1/sqrt(dh) is
        # folded into the Q columns so the flash kernel never rescales scores.
        "w_qkv": jnp.concatenate([wq * scale, wk, wv], axis=1).astype(jnp.bfloat16),
        "b_qkv": jnp.concatenate([bq * scale, bk, bv])[None, :],      # (1, 3H) f32
    }


def flash_self_attention(params, hidden_states, num_heads, attention_mask=None):
    """hidden_states: (B, S, hidden) f32 -> (context,), context (B, S, hidden) f32."""
    B, S, H = hidden_states.shape

    # Fused QKV projection: bf16 operands, bf16 output (single Pallas matmul).
    # TODO(synk): PyTorch casts qkv to float16; TPU MXU path uses bfloat16 instead.
    x = hidden_states.reshape(B * S, H).astype(jnp.bfloat16)
    qkv = linear_bf16(x, params["w_qkv"], params["b_qkv"])     # (B*S, 3H) bf16
    qkv = qkv.reshape(B, S, 3 * H)   # heads stay packed '(h d)' -> no transposes

    # Key padding mask -> additive f32 bias (0 keep, -1e30 pad), one row per
    # batch.  Unmasked path compiles a bias-free kernel variant.
    if attention_mask is None:
        bias = None
    else:
        bias = ((1.0 - attention_mask.astype(jnp.float32)) * (-1e30)).reshape(B, 1, S)

    # TODO(synk): attention_probs_dropout_prob is not applied (inference semantics);
    # head_mask / encoder_* / past_key_value args of the PyTorch module are unused here.
    ctx = flash_attention_packed(qkv, bias, num_heads)          # (B, S, H) f32
    return (ctx,)


# ----------------------------------------------------------------------------
# Pure-JAX reference for a sanity check
# ----------------------------------------------------------------------------
def reference(params, hidden_states, num_heads, attention_mask=None):
    B, S, H = hidden_states.shape
    dh = H // num_heads
    xb = hidden_states.astype(jnp.bfloat16).astype(jnp.float32)

    def proj(w, b):
        wb = w.astype(jnp.bfloat16).astype(jnp.float32)
        return (xb @ wb + b).astype(jnp.bfloat16).astype(jnp.float32)

    q = proj(params["wq"], params["bq"]).reshape(B, S, num_heads, dh)
    k = proj(params["wk"], params["bk"]).reshape(B, S, num_heads, dh)
    v = proj(params["wv"], params["bv"]).reshape(B, S, num_heads, dh)

    s = jnp.einsum("bqhd,bkhd->bhqk", q, k) / (dh ** 0.5)
    if attention_mask is not None:
        s = s + (1.0 - attention_mask[:, None, None, :].astype(jnp.float32)) * (-1e30)
    p = jax.nn.softmax(s, axis=-1)
    ctx = jnp.einsum("bhqk,bkhd->bqhd", p, v)
    return ctx.reshape(B, S, H).astype(jnp.float32)


if __name__ == "__main__":
    B, S, HIDDEN, HEADS = 2, 256, 128, 4

    key = jax.random.PRNGKey(0)
    k_param, k_x = jax.random.split(key)
    params = init_params(k_param, HIDDEN, HEADS)
    hidden_states = jax.random.normal(k_x, (B, S, HIDDEN), jnp.float32)

    # No mask (bias-free kernel variant)
    (ctx,) = flash_self_attention(params, hidden_states, HEADS, attention_mask=None)
    ctx = jax.block_until_ready(ctx)
    ref = reference(params, hidden_states, HEADS, attention_mask=None)
    assert ctx.shape == (B, S, HIDDEN) and ctx.dtype == jnp.float32
    err = float(jnp.max(jnp.abs(ctx - ref)))
    assert err < 5e-2, f"max abs error (no mask) {err}"

    # Key-padding mask: pad the last 64 keys of the second batch element.
    mask = jnp.ones((B, S), jnp.float32).at[1, S - 64:].set(0.0)
    (ctx_m,) = flash_self_attention(params, hidden_states, HEADS, attention_mask=mask)
    ctx_m = jax.block_until_ready(ctx_m)
    ref_m = reference(params, hidden_states, HEADS, attention_mask=mask)
    err_m = float(jnp.max(jnp.abs(ctx_m - ref_m)))
    assert err_m < 5e-2, f"max abs error (masked) {err_m}"

    print("KERNEL_OK")
</pallas_src>

<mosaic_0001>
module attributes {stable_mosaic.version = 11 : i64} {
  func.func @_linear_kernel(%arg0: i32, %arg1: i32, %arg2: i32, %arg3: memref<512x128xbf16, #tpu.memory_space<vmem>>, %arg4: memref<128x128xbf16, #tpu.memory_space<vmem>>, %arg5: memref<1x128xf32, #tpu.memory_space<vmem>>, %arg6: memref<512x128xbf16, #tpu.memory_space<vmem>>, %arg7: memref<512x128xf32, #tpu.memory_space<vmem>>) attributes {dimension_semantics = [#tpu.dimension_semantics<parallel>, #tpu.dimension_semantics<parallel>, #tpu.dimension_semantics<arbitrary>], iteration_bounds = array<i64: 1, 3, 1>, scalar_prefetch = 0 : i64, scratch_operands = 1 : i64, tpu.core_type = #tpu.core_type<tc>, window_params = [{transform_indices = @transform_0, window_bounds = array<i64: 512, 128>}, {transform_indices = @transform_1, window_bounds = array<i64: 128, 128>}, {transform_indices = @transform_2, window_bounds = array<i64: 1, 128>}, {transform_indices = @transform_3, window_bounds = array<i64: 512, 128>}]} {
    %c0_i32 = arith.constant 0 : i32
    %0 = arith.cmpi eq, %arg2, %c0_i32 : i32
    %1 = arith.extui %0 : i1 to i32
    %c0_i32_0 = arith.constant 0 : i32
    %2 = arith.cmpi ne, %1, %c0_i32_0 : i32
    scf.if %2 {
      %cst_10 = arith.constant 0.000000e+00 : f32
      %12 = vector.broadcast %cst_10 : f32 to vector<512x128xf32>
      %c0_11 = arith.constant 0 : index
      %c0_12 = arith.constant 0 : index
      %13 = vector.load %arg7[%c0_11, %c0_12] : memref<512x128xf32, #tpu.memory_space<vmem>>, vector<512x128xf32>
      tpu.vector_store %arg7[%c0_11, %c0_12], %12 {strides = array<i32>} : memref<512x128xf32, #tpu.memory_space<vmem>>, vector<512x128xf32>,
    } else {
    }
    %c0 = arith.constant 0 : index
    %c0_1 = arith.constant 0 : index
    %3 = vector.load %arg7[%c0, %c0_1] : memref<512x128xf32, #tpu.memory_space<vmem>>, vector<512x128xf32>
    %c0_2 = arith.constant 0 : index
    %c0_3 = arith.constant 0 : index
    %4 = vector.load %arg3[%c0_2, %c0_3] : memref<512x128xbf16, #tpu.memory_space<vmem>>, vector<512x128xbf16>
    %c0_4 = arith.constant 0 : index
    %c0_5 = arith.constant 0 : index
    %5 = vector.load %arg4[%c0_4, %c0_5] : memref<128x128xbf16, #tpu.memory_space<vmem>>, vector<128x128xbf16>
    %cst = arith.constant dense<0.000000e+00> : vector<512x128xf32>
    %6 = tpu.matmul %4, %5, %cst {dimension_numbers = #tpu.dot_dimension_numbers<[1], [0], [0], [1], [0, 0, 1, 1], [], []>} : vector<512x128xbf16>, vector<128x128xbf16>, vector<512x128xf32> -> vector<512x128xf32>
    %7 = arith.addf %3, %6 : vector<512x128xf32>
    %c0_6 = arith.constant 0 : index
    %c0_7 = arith.constant 0 : index
    %8 = vector.load %arg7[%c0_6, %c0_7] : memref<512x128xf32, #tpu.memory_space<vmem>>, vector<512x128xf32>
    tpu.vector_store %arg7[%c0_6, %c0_7], %7 {strides = array<i32>} : memref<512x128xf32, #tpu.memory_space<vmem>>, vector<512x128xf32>,
    %c0_i32_8 = arith.constant 0 : i32
    %9 = arith.cmpi eq, %arg2, %c0_i32_8 : i32
    %10 = arith.extui %9 : i1 to i32
    %c0_i32_9 = arith.constant 0 : i32
    %11 = arith.cmpi ne, %10, %c0_i32_9 : i32
    scf.if %11 {
      %c0_10 = arith.constant 0 : index
      %c0_11 = arith.constant 0 : index
      %12 = vector.load %arg7[%c0_10, %c0_11] : memref<512x128xf32, #tpu.memory_space<vmem>>, vector<512x128xf32>
      %c0_12 = arith.constant 0 : index
      %c0_13 = arith.constant 0 : index
      %13 = vector.load %arg5[%c0_12, %c0_13] : memref<1x128xf32, #tpu.memory_space<vmem>>, vector<1x128xf32>
      %14 = vector.broadcast %13 : vector<1x128xf32> to vector<512x128xf32>
      %15 = arith.addf %12, %14 : vector<512x128xf32>
      %16 = arith.truncf %15 : vector<512x128xf32> to vector<512x128xbf16>
      %c0_14 = arith.constant 0 : index
      %c0_15 = arith.constant 0 : index
      %17 = vector.load %arg6[%c0_14, %c0_15] : memref<512x128xbf16, #tpu.memory_space<vmem>>, vector<512x128xbf16>
      tpu.vector_store %arg6[%c0_14, %c0_15], %16 {strides = array<i32>} : memref<512x128xbf16, #tpu.memory_space<vmem>>, vector<512x128xbf16>,
    } else {
    }
    return
  }
  func.func @transform_0(%arg0: i32, %arg1: i32, %arg2: i32) -> (i32, i32) {
    %c0_i32 = arith.constant 0 : i32
    return %arg0, %arg2 : i32, i32
  }
  func.func @transform_1(%arg0: i32, %arg1: i32, %arg2: i32) -> (i32, i32) {
    %c0_i32 = arith.constant 0 : i32
    return %arg2, %arg1 : i32, i32
  }
  func.func @transform_2(%arg0: i32, %arg1: i32, %arg2: i32) -> (i32, i32) {
    %c0_i32 = arith.constant 0 : i32
    %c0_i32_0 = arith.constant 0 : i32
    return %c0_i32, %arg1 : i32, i32
  }
  func.func @transform_3(%arg0: i32, %arg1: i32, %arg2: i32) -> (i32, i32) {
    %c0_i32 = arith.constant 0 : i32
    return %arg0, %arg1 : i32, i32
  }
}

</mosaic_0001>

<llo_original>
// kernel: tpu_custom_call.1
$region0: #{tpu_custom_call.1}
  #allocation0 [shape = 'u32[]', space=smem, size = 0x4, offset = 0x4, fixed_abs, tag = 'smem constant byte address 0x4 - core index']
  #allocation1 [shape = 'u32[144,128]{1,0:T(1,128)}', space=vmem, size = 0x12000, scoped, tag = 'internal scratch']
  #allocation2 [shape = 'f32[512,128]{1,0:T(8,128)}', space=vmem, size = 0x40000, scoped, tag = 'scratch operand']
  %s0 = inlined_call_operand.hbm [shape: bf16[512,128], index: 0, kind: input, shape index: {}]
  %s1 = inlined_call_operand.hbm [shape: bf16[128,384], index: 1, kind: input, shape index: {}]
  %s2 = inlined_call_operand.vmem [shape: f32[1,384], index: 2, kind: input, shape index: {}]
  %s3 = inlined_call_operand.hbm [shape: bf16[512,384], index: 3, kind: output, shape index: {}]
  %s4 = sld [smem:[#allocation0]]
  $region61: #{tpu_custom_call.1} parent=0
    _
  %s6 = ssub.s32 1, %s4
  %s7 = scalar_select 0, %s6, %s4
  $region1: #{tpu_custom_call.1} parent=0
    #allocation3 [shape = 'u8[131072]{0}', space=vmem, size = 0x20000, scoped, tag = 'input window, operand 0, single buffered']
    #allocation4 [shape = 's32[2]{0}', space=sflag, size = 0x8, scoped, tag = 'scoped memory for tpu_custom_call.1']
    #allocation5 [shape = 's32[2]{0}', space=sflag, size = 0x8, scoped, tag = 'scoped memory for tpu_custom_call.1']
    #allocation6 [shape = 'u8[65536]{0}', space=vmem, size = 0x10000, scoped, tag = 'input window, operand 1']
    #allocation7 [shape = 's32[2]{0}', space=sflag, size = 0x8, scoped, tag = 'scoped memory for tpu_custom_call.1']
    #allocation8 [shape = 'u8[262144]{0}', space=vmem, size = 0x40000, scoped, tag = 'output window, operand 0']
    %8 = vsyncpa [#allocation4], 0
    %9 = vsyncpa [#allocation7], 0
    %s10 = scalar_lea.sflag [#allocation7], 1
    %11 = vsyncpa %s10, 0
    %12 = vsyncpa [#allocation5], 0
    %s13 = scalar_lea.sflag [#allocation5], 1
    %14 = vsyncpa %s13, 0
    loop: start=0, step=1, limit=5
    $region2: #{tpu_custom_call.1} parent=1 // loop_pre_header
      _
    $region3: #{tpu_custom_call.1} parent=1 // loop_header
      %s16 = sphi 0, %s20
      %p17 = scmp.ge.s32.totalorder %s16, 5
      %s23 = sphi 0, %s42
      %s24 = sphi 0, %s38
      %s25 = sphi 0, %s34
      %s26 = sphi 0, %s23
      %s27 = sphi 0, %s24
      %s28 = sphi 0, %s25
      %s29 = sphi 0, %s26
      %s30 = sphi 0, %s27
      %s31 = sphi 0, %s28
      %s47 = sphi 0, %s49
      %s50 = sphi 0, %s47
      %s51 = sphi 0, %s50
      %s67 = sphi 0, %s51
      %s75 = sphi 0, %s77
      %s78 = sphi 0, %s75
      %s79 = sphi 0, %s78
      %s95 = sphi 0, %s79
      %s101 = sphi 0, %s103
      %s104 = sphi 0, %s101
      %s105 = sphi 0, %s104
      %s121 = sphi 0, %s105
      %s129 = sphi 0, %s131
      %s132 = sphi 0, %s129
      %s133 = sphi 0, %s132
      %s149 = sphi 0, %s133
    $region4: #{tpu_custom_call.1} parent=1 // loop_header_branch
      %19 = sbr.rel (%p17) target = $region8
    $region5: #{tpu_custom_call.1} parent=1 // loop_body
      %s21 = ssub.s32 %s16, 1
      %s22 = ssub.s32 %s16, 2
      %s32 = sadd.s32 1, %s25
      %p33 = scmp.ge.s32.totalorder %s32, 1
      %s34 = scalar_select %p33, 0, %s32
      %s35 = sadd.s32 1, %s24
      %s36 = scalar_select %p33, %s35, %s24
      %p37 = scmp.ge.s32.totalorder %s36, 3
      %s38 = scalar_select %p37, 0, %s36
      %s39 = sadd.s32 1, %s23
      %s40 = scalar_select %p37, %s39, %s23
      %p41 = scmp.ge.s32.totalorder %s40, 1
      %s42 = scalar_select %p41, 0, %s40
      %s43 = ssub.s32 %s23, %s42
      %s44 = ssub.s32 %s25, %s34
      %s45 = sor.u32 %s43, %s44
      %p46 = scmp.eq.s32.totalorder %s45, 0
      %s48 = sadd.s32 %s47, 1
      %s49 = scalar_select %p46, %s47, %s48
      %p52 = pneg %p46
      %p53 = scmp.eq.s32.totalorder %s16, 2
      %p54 = por %p52, %p53
      %p55 = scmp.ne.s32.totalorder %s47, %s50
      %p56 = scmp.eq.s32.totalorder %s16, 0
      %p57 = por %p55, %p56
      %p58 = scmp.ne.s32.totalorder %s47, %s50
      %p59 = scmp.eq.s32.totalorder %s21, 2
      %p60 = por %p58, %p59
      %p61 = scmp.ne.s32.totalorder %s50, %s51
      %p62 = scmp.eq.s32.totalorder %s21, 0
      %p63 = por %p61, %p62
      %p64 = scmp.ne.s32.totalorder %s50, %s51
      %p65 = scmp.eq.s32.totalorder %s22, 2
      %p66 = por %p64, %p65
      %p68 = scmp.ne.s32.totalorder %s51, %s67
      %p69 = scmp.eq.s32.totalorder %s22, 0
      %p70 = por %p68, %p69
      %s71 = ssub.s32 %s25, %s34
      %s72 = ssub.s32 %s24, %s38
      %s73 = sor.u32 %s71, %s72
      %p74 = scmp.eq.s32.totalorder %s73, 0
      %s76 = sadd.s32 %s75, 1
      %s77 = scalar_select %p74, %s75, %s76
      %p80 = pneg %p74
      %p81 = scmp.eq.s32.totalorder %s16, 2
      %p82 = por %p80, %p81
      %p83 = scmp.ne.s32.totalorder %s75, %s78
      %p84 = scmp.eq.s32.totalorder %s16, 0
      %p85 = por %p83, %p84
      %p86 = scmp.ne.s32.totalorder %s75, %s78
      %p87 = scmp.eq.s32.totalorder %s21, 2
      %p88 = por %p86, %p87
      %p89 = scmp.ne.s32.totalorder %s78, %s79
      %p90 = scmp.eq.s32.totalorder %s21, 0
      %p91 = por %p89, %p90
      %p92 = scmp.ne.s32.totalorder %s78, %s79
      %p93 = scmp.eq.s32.totalorder %s22, 2
      %p94 = por %p92, %p93
      %p96 = scmp.ne.s32.totalorder %s79, %s95
      %p97 = scmp.eq.s32.totalorder %s22, 0
      %p98 = por %p96, %p97
      %s99 = ssub.s32 %s24, %s38
      %p100 = scmp.eq.s32.totalorder %s99, 0
      %s102 = sadd.s32 %s101, 1
      %s103 = scalar_select %p100, %s101, %s102
      %p106 = pneg %p100
      %p107 = scmp.eq.s32.totalorder %s16, 2
      %p108 = por %p106, %p107
      %p109 = scmp.ne.s32.totalorder %s101, %s104
      %p110 = scmp.eq.s32.totalorder %s16, 0
      %p111 = por %p109, %p110
      %p112 = scmp.ne.s32.totalorder %s101, %s104
      %p113 = scmp.eq.s32.totalorder %s21, 2
      %p114 = por %p112, %p113
      %p115 = scmp.ne.s32.totalorder %s104, %s105
      %p116 = scmp.eq.s32.totalorder %s21, 0
      %p117 = por %p115, %p116
      %p118 = scmp.ne.s32.totalorder %s104, %s105
      %p119 = scmp.eq.s32.totalorder %s22, 2
      %p120 = por %p118, %p119
      %p122 = scmp.ne.s32.totalorder %s105, %s121
      %p123 = scmp.eq.s32.totalorder %s22, 0
      %p124 = por %p122, %p123
      %s125 = ssub.s32 %s23, %s42
      %s126 = ssub.s32 %s24, %s38
      %s127 = sor.u32 %s125, %s126
      %p128 = scmp.eq.s32.totalorder %s127, 0
      %s130 = sadd.s32 %s129, 1
      %s131 = scalar_select %p128, %s129, %s130
      %p134 = pneg %p128
      %p135 = scmp.eq.s32.totalorder %s16, 2
      %p136 = por %p134, %p135
      %p137 = scmp.ne.s32.totalorder %s129, %s132
      %p138 = scmp.eq.s32.totalorder %s16, 0
      %p139 = por %p137, %p138
      %p140 = scmp.ne.s32.totalorder %s129, %s132
      %p141 = scmp.eq.s32.totalorder %s21, 2
      %p142 = por %p140, %p141
      %p143 = scmp.ne.s32.totalorder %s132, %s133
      %p144 = scmp.eq.s32.totalorder %s21, 0
      %p145 = por %p143, %p144
      %p146 = scmp.ne.s32.totalorder %s132, %s133
      %p147 = scmp.eq.s32.totalorder %s22, 2
      %p148 = por %p146, %p147
      %p150 = scmp.ne.s32.totalorder %s133, %s149
      %p151 = scmp.eq.s32.totalorder %s22, 0
      %p152 = por %p150, %p151
      %p153 = scmp.le.s32.totalorder 1, %s16
      %p154 = scmp.lt.s32.totalorder %s16, 4
      %p155 = pnand %p153, %p154
      %p156 = pneg %p155
      // Predicated region
      $region9: #{tpu_custom_call.1} parent=5 // pred_check
        _
      $region10: #{tpu_custom_call.1} parent=5 // pred_check_branch
        %158 = sbr.rel (%p155) target = $region12
      $region11: #{tpu_custom_call.1} parent=5 // pred_region
        %s159 = ssub.s32 %s16, 1
        // Predicated region
        $region13: #{tpu_custom_call.1} parent=11 // pred_check
          %p160 = pneg %p63
        $region14: #{tpu_custom_call.1} parent=11 // pred_check_branch
          %162 = sbr.rel (%p160) target = $region16
        $region15: #{tpu_custom_call.1} parent=11 // pred_region
          %s163 = smul.u32 64, %s26
          %s165 = ssub.s32 4096, 4096
          %166 = vsyncadd [#allocation4], %s165
          %s167 = sadd.s32 %s28, %s163
          %s168 = smul.addr %s167, 64
          %s169 = scalar_lea.hbm %s0, %s168
          %s170 = sshll.u32 [#allocation3], 4
          %s171 = int_to_ptr.vmem [resolvable:$true] %s170
          %176 = dma.hbm_to_vmem [thread:$0]  %s169, 4096, %s171, [#allocation4], 64, 64, 4
        $region16: #{tpu_custom_call.1} parent=11 // pred_fallthru
          _
      $region12: #{tpu_custom_call.1} parent=5 // pred_fallthru
        _
      %p177 = scmp.lt.s32.totalorder %s16, 3
      // Predicated region
      $region17: #{tpu_custom_call.1} parent=5 // pred_check
        %p178 = pneg %p177
      $region18: #{tpu_custom_call.1} parent=5 // pred_check_branch
        %180 = sbr.rel (%p178) target = $region20
      $region19: #{tpu_custom_call.1} parent=5 // pred_region
        // Predicated region
        $region21: #{tpu_custom_call.1} parent=19 // pred_check
          %p181 = pneg %p85
        $region22: #{tpu_custom_call.1} parent=19 // pred_check_branch
          %183 = sbr.rel (%p181) target = $region24
        $region23: #{tpu_custom_call.1} parent=19 // pred_region
          %s184 = sand.u32 %s75, 1
          %s185 = scalar_lea.sflag [#allocation7], %s184
          %s186 = sand.u32 %s75, 1
          %s187 = smul.addr %s186, 64
          %s188 = scalar_lea.vmem [#allocation6], %s187
          %s189 = smul.u32 16, %s25
          %s191 = ssub.s32 1024, 1024
          %192 = vsyncadd %s185, %s191
          %s193 = smul.addr %s189, 3
          %s194 = sadd.s32 %s24, %s193
          %s195 = smul.addr %s194, 64
          %s196 = scalar_lea.hbm %s1, %s195
          %s197 = sshll.u32 %s188, 4
          %s198 = int_to_ptr.vmem [resolvable:$true] %s197
          %203 = dma.hbm_to_vmem [thread:$0]  %s196, 1024, %s198, %s185, 192, 64, 4
        $region24: #{tpu_custom_call.1} parent=19 // pred_fallthru
          _
        // Predicated region
        $region25: #{tpu_custom_call.1} parent=19 // pred_check
          %p204 = pneg %p111
        $region26: #{tpu_custom_call.1} parent=19 // pred_check_branch
          %206 = sbr.rel (%p204) target = $region28
        $region27: #{tpu_custom_call.1} parent=19 // pred_region
          %p207 = scmp.lt.s32.totalorder %s24, 2
          %s208 = scalar_select %p207, %s24, 2
          %s209 = scalar_lea.vmem %s2, %s208
        $region28: #{tpu_custom_call.1} parent=19 // pred_fallthru
          _
      $region20: #{tpu_custom_call.1} parent=5 // pred_fallthru
        _
      %p210 = scmp.le.s32.totalorder 1, %s16
      %p211 = scmp.lt.s32.totalorder %s16, 4
      %p212 = pnand %p210, %p211
      %p213 = pneg %p212
      // Predicated region
      $region29: #{tpu_custom_call.1} parent=5 // pred_check
        _
      $region30: #{tpu_custom_call.1} parent=5 // pred_check_branch
        %215 = sbr.rel (%p212) target = $region32
      $region31: #{tpu_custom_call.1} parent=5 // pred_region
        %s216 = ssub.s32 %s16, 1
        // Predicated region
        $region33: #{tpu_custom_call.1} parent=31 // pred_check
          %p217 = pneg %p63
        $region34: #{tpu_custom_call.1} parent=31 // pred_check_branch
          %219 = sbr.rel (%p217) target = $region36
        $region35: #{tpu_custom_call.1} parent=31 // pred_region
          %220 = dma.done [#allocation4], 4096
        $region36: #{tpu_custom_call.1} parent=31 // pred_fallthru
          _
        %s221 = sand.u32 %s78, 1
        %s222 = scalar_lea.sflag [#allocation7], %s221
        %s223 = sand.u32 %s78, 1
        %s224 = smul.addr %s223, 64
        %s225 = scalar_lea.vmem [#allocation6], %s224
        // Predicated region
        $region37: #{tpu_custom_call.1} parent=31 // pred_check
          %p226 = pneg %p91
        $region38: #{tpu_custom_call.1} parent=31 // pred_check_branch
          %228 = sbr.rel (%p226) target = $region40
        $region39: #{tpu_custom_call.1} parent=31 // pred_region
          %229 = dma.done %s222, 1024
        $region40: #{tpu_custom_call.1} parent=31 // pred_fallthru
          _
        %p230 = pneg %p63
        %p231 = pneg %p60
        %s232 = sand.u32 %s78, 1
        %s233 = scalar_lea.sflag [#allocation7], %s232
        %s234 = sand.u32 %s78, 1
        %s235 = smul.addr %s234, 64
        %s236 = scalar_lea.vmem [#allocation6], %s235
        %p237 = pneg %p91
        %p238 = pneg %p88
        %p239 = scmp.lt.s32.totalorder %s27, 2
        %s240 = scalar_select %p239, %s27, 2
        %s241 = scalar_lea.vmem %s2, %s240
        %p242 = pneg %p117
        %p243 = pneg %p114
        %p244 = pneg %p145
        %p245 = pneg %p142
        %s246 = sand.u32 %s132, 1
        %s247 = scalar_lea.sflag [#allocation5], %s246
        %s248 = sand.u32 %s132, 1
        %s249 = smul.addr %s248, 256
        %s250 = scalar_lea.vmem [#allocation8], %s249
        %s251 = smul.u32 64, %s26
        %s252 = smul.u32 16, %s28
        %p253 = scmp.lt.s32.totalorder %s27, 2
        %s254 = scalar_select %p253, %s27, 2
        %s255 = scalar_lea.vmem %s2, %s254
        %s256 = smul.u32 64, %s26
        %p258 = scmp.eq.s32.totalorder %s28, 0
        // Predicated region
        $region41: #{tpu_custom_call.1} parent=31 // pred_check
          %p259 = pneg %p258
        $region42: #{tpu_custom_call.1} parent=31 // pred_check_branch
          %261 = sbr.rel (%p259) target = $region44
        $region43: #{tpu_custom_call.1} parent=31 // pred_region
          %262 = vst [vmem:[#allocation2] sm:$0xff] 0.0
          %263 = vst [vmem:[#allocation2 + $0x8] sm:$0xff] 0.0
          %264 = vst [vmem:[#allocation2 + $0x10] sm:$0xff] 0.0
          %265 = vst [vmem:[#allocation2 + $0x18] sm:$0xff] 0.0
          %266 = vst [vmem:[#allocation2 + $0x20] sm:$0xff] 0.0
          %267 = vst [vmem:[#allocation2 + $0x28] sm:$0xff] 0.0
          %268 = vst [vmem:[#allocation2 + $0x30] sm:$0xff] 0.0
          %269 = vst [vmem:[#allocation2 + $0x38] sm:$0xff] 0.0
          %270 = vst [vmem:[#allocation2 + $0x40] sm:$0xff] 0.0
          %271 = vst [vmem:[#allocation2 + $0x48] sm:$0xff] 0.0
          %272 = vst [vmem:[#allocation2 + $0x50] sm:$0xff] 0.0
          %273 = vst [vmem:[#allocation2 + $0x58] sm:$0xff] 0.0
          %274 = vst [vmem:[#allocation2 + $0x60] sm:$0xff] 0.0
          %275 = vst [vmem:[#allocation2 + $0x68] sm:$0xff] 0.0
          %276 = vst [vmem:[#allocation2 + $0x70] sm:$0xff] 0.0
          %277 = vst [vmem:[#allocation2 + $0x78] sm:$0xff] 0.0
          %278 = vst [vmem:[#allocation2 + $0x80] sm:$0xff] 0.0
          %279 = vst [vmem:[#allocation2 + $0x88] sm:$0xff] 0.0
          %280 = vst [vmem:[#allocation2 + $0x90] sm:$0xff] 0.0
          %281 = vst [vmem:[#allocation2 + $0x98] sm:$0xff] 0.0
          %282 = vst [vmem:[#allocation2 + $0xa0] sm:$0xff] 0.0
          %283 = vst [vmem:[#allocation2 + $0xa8] sm:$0xff] 0.0
          %284 = vst [vmem:[#allocation2 + $0xb0] sm:$0xff] 0.0
          %285 = vst [vmem:[#allocation2 + $0xb8] sm:$0xff] 0.0
          %286 = vst [vmem:[#allocation2 + $0xc0] sm:$0xff] 0.0
          %287 = vst [vmem:[#allocation2 + $0xc8] sm:$0xff] 0.0
          %288 = vst [vmem:[#allocation2 + $0xd0] sm:$0xff] 0.0
          %289 = vst [vmem:[#allocation2 + $0xd8] sm:$0xff] 0.0
          %290 = vst [vmem:[#allocation2 + $0xe0] sm:$0xff] 0.0
          %291 = vst [vmem:[#allocation2 + $0xe8] sm:$0xff] 0.0
          %292 = vst [vmem:[#allocation2 + $0xf0] sm:$0xff] 0.0
          %293 = vst [vmem:[#allocation2 + $0xf8] sm:$0xff] 0.0
          %294 = vst [vmem:[#allocation2 + $0x100] sm:$0xff] 0.0
          %295 = vst [vmem:[#allocation2 + $0x108] sm:$0xff] 0.0
          %296 = vst [vmem:[#allocation2 + $0x110] sm:$0xff] 0.0
          %297 = vst [vmem:[#allocation2 + $0x118] sm:$0xff] 0.0
          %298 = vst [vmem:[#allocation2 + $0x120] sm:$0xff] 0.0
          %299 = vst [vmem:[#allocation2 + $0x128] sm:$0xff] 0.0
          %300 = vst [vmem:[#allocation2 + $0x130] sm:$0xff] 0.0
          %301 = vst [vmem:[#allocation2 + $0x138] sm:$0xff] 0.0
          %302 = vst [vmem:[#allocation2 + $0x140] sm:$0xff] 0.0
          %303 = vst [vmem:[#allocation2 + $0x148] sm:$0xff] 0.0
          %304 = vst [vmem:[#allocation2 + $0x150] sm:$0xff] 0.0
          %305 = vst [vmem:[#allocation2 + $0x158] sm:$0xff] 0.0
          %306 = vst [vmem:[#allocation2 + $0x160] sm:$0xff] 0.0
          %307 = vst [vmem:[#allocation2 + $0x168] sm:$0xff] 0.0
          %308 = vst [vmem:[#allocation2 + $0x170] sm:$0xff] 0.0
          %309 = vst [vmem:[#allocation2 + $0x178] sm:$0xff] 0.0
          %310 = vst [vmem:[#allocation2 + $0x180] sm:$0xff] 0.0
          %311 = vst [vmem:[#allocation2 + $0x188] sm:$0xff] 0.0
          %312 = vst [vmem:[#allocation2 + $0x190] sm:$0xff] 0.0
          %313 = vst [vmem:[#allocation2 + $0x198] sm:$0xff] 0.0
          %314 = vst [vmem:[#allocation2 + $0x1a0] sm:$0xff] 0.0
          %315 = vst [vmem:[#allocation2 + $0x1a8] sm:$0xff] 0.0
          %316 = vst [vmem:[#allocation2 + $0x1b0] sm:$0xff] 0.0
          %317 = vst [vmem:[#allocation2 + $0x1b8] sm:$0xff] 0.0
          %318 = vst [vmem:[#allocation2 + $0x1c0] sm:$0xff] 0.0
          %319 = vst [vmem:[#allocation2 + $0x1c8] sm:$0xff] 0.0
          %320 = vst [vmem:[#allocation2 + $0x1d0] sm:$0xff] 0.0
          %321 = vst [vmem:[#allocation2 + $0x1d8] sm:$0xff] 0.0
          %322 = vst [vmem:[#allocation2 + $0x1e0] sm:$0xff] 0.0
          %323 = vst [vmem:[#allocation2 + $0x1e8] sm:$0xff] 0.0
          %324 = vst [vmem:[#allocation2 + $0x1f0] sm:$0xff] 0.0
          %325 = vst [vmem:[#allocation2 + $0x1f8] sm:$0xff] 0.0
        $region44: #{tpu_custom_call.1} parent=31 // pred_fallthru
          _
        %v326 = vld [vmem:[#allocation2] sm:$0xff]
        %v327 = vld [vmem:[#allocation2 + $0x8] sm:$0xff]
        %v328 = vld [vmem:[#allocation2 + $0x10] sm:$0xff]
        %v329 = vld [vmem:[#allocation2 + $0x18] sm:$0xff]
        %v330 = vld [vmem:[#allocation2 + $0x20] sm:$0xff]
        %v331 = vld [vmem:[#allocation2 + $0x28] sm:$0xff]
        %v332 = vld [vmem:[#allocation2 + $0x30] sm:$0xff]
        %v333 = vld [vmem:[#allocation2 + $0x38] sm:$0xff]
        %v334 = vld [vmem:[#allocation2 + $0x40] sm:$0xff]
        %v335 = vld [vmem:[#allocation2 + $0x48] sm:$0xff]
        %v336 = vld [vmem:[#allocation2 + $0x50] sm:$0xff]
        %v337 = vld [vmem:[#allocation2 + $0x58] sm:$0xff]
        %v338 = vld [vmem:[#allocation2 + $0x60] sm:$0xff]
        %v339 = vld [vmem:[#allocation2 + $0x68] sm:$0xff]
        %v340 = vld [vmem:[#allocation2 + $0x70] sm:$0xff]
        %v341 = vld [vmem:[#allocation2 + $0x78] sm:$0xff]
        %v342 = vld [vmem:[#allocation2 + $0x80] sm:$0xff]
        %v343 = vld [vmem:[#allocation2 + $0x88] sm:$0xff]
        %v344 = vld [vmem:[#allocation2 + $0x90] sm:$0xff]
        %v345 = vld [vmem:[#allocation2 + $0x98] sm:$0xff]
        %v346 = vld [vmem:[#allocation2 + $0xa0] sm:$0xff]
        %v347 = vld [vmem:[#allocation2 + $0xa8] sm:$0xff]
        %v348 = vld [vmem:[#allocation2 + $0xb0] sm:$0xff]
        %v349 = vld [vmem:[#allocation2 + $0xb8] sm:$0xff]
        %v350 = vld [vmem:[#allocation2 + $0xc0] sm:$0xff]
        %v351 = vld [vmem:[#allocation2 + $0xc8] sm:$0xff]
        %v352 = vld [vmem:[#allocation2 + $0xd0] sm:$0xff]
        %v353 = vld [vmem:[#allocation2 + $0xd8] sm:$0xff]
        %v354 = vld [vmem:[#allocation2 + $0xe0] sm:$0xff]
        %v355 = vld [vmem:[#allocation2 + $0xe8] sm:$0xff]
        %v356 = vld [vmem:[#allocation2 + $0xf0] sm:$0xff]
        %v357 = vld [vmem:[#allocation2 + $0xf8] sm:$0xff]
        %v358 = vld [vmem:[#allocation2 + $0x100] sm:$0xff]
        %v359 = vld [vmem:[#allocation2 + $0x108] sm:$0xff]
        %v360 = vld [vmem:[#allocation2 + $0x110] sm:$0xff]
        %v361 = vld [vmem:[#allocation2 + $0x118] sm:$0xff]
        %v362 = vld [vmem:[#allocation2 + $0x120] sm:$0xff]
        %v363 = vld [vmem:[#allocation2 + $0x128] sm:$0xff]
        %v364 = vld [vmem:[#allocation2 + $0x130] sm:$0xff]
        %v365 = vld [vmem:[#allocation2 + $0x138] sm:$0xff]
        %v366 = vld [vmem:[#allocation2 + $0x140] sm:$0xff]
        %v367 = vld [vmem:[#allocation2 + $0x148] sm:$0xff]
        %v368 = vld [vmem:[#allocation2 + $0x150] sm:$0xff]
        %v369 = vld [vmem:[#allocation2 + $0x158] sm:$0xff]
        %v370 = vld [vmem:[#allocation2 + $0x160] sm:$0xff]
        %v371 = vld [vmem:[#allocation2 + $0x168] sm:$0xff]
        %v372 = vld [vmem:[#allocation2 + $0x170] sm:$0xff]
        %v373 = vld [vmem:[#allocation2 + $0x178] sm:$0xff]
        %v374 = vld [vmem:[#allocation2 + $0x180] sm:$0xff]
        %v375 = vld [vmem:[#allocation2 + $0x188] sm:$0xff]
        %v376 = vld [vmem:[#allocation2 + $0x190] sm:$0xff]
        %v377 = vld [vmem:[#allocation2 + $0x198] sm:$0xff]
        %v378 = vld [vmem:[#allocation2 + $0x1a0] sm:$0xff]
        %v379 = vld [vmem:[#allocation2 + $0x1a8] sm:$0xff]
        %v380 = vld [vmem:[#allocation2 + $0x1b0] sm:$0xff]
        %v381 = vld [vmem:[#allocation2 + $0x1b8] sm:$0xff]
        %v382 = vld [vmem:[#allocation2 + $0x1c0] sm:$0xff]
        %v383 = vld [vmem:[#allocation2 + $0x1c8] sm:$0xff]
        %v384 = vld [vmem:[#allocation2 + $0x1d0] sm:$0xff]
        %v385 = vld [vmem:[#allocation2 + $0x1d8] sm:$0xff]
        %v386 = vld [vmem:[#allocation2 + $0x1e0] sm:$0xff]
        %v387 = vld [vmem:[#allocation2 + $0x1e8] sm:$0xff]
        %v388 = vld [vmem:[#allocation2 + $0x1f0] sm:$0xff]
        %v389 = vld [vmem:[#allocation2 + $0x1f8] sm:$0xff]
        %v390 = vld [vmem:[#allocation3] sm:$0xf]
        %v391 = vld [vmem:[#allocation3 + $0x4] sm:$0xf]
        %v392 = vld [vmem:[#allocation3 + $0x8] sm:$0xf]
        %v393 = vld [vmem:[#allocation3 + $0xc] sm:$0xf]
        %v394 = vld [vmem:[#allocation3 + $0x10] sm:$0xf]
        %v395 = vld [vmem:[#allocation3 + $0x14] sm:$0xf]
        %v396 = vld [vmem:[#allocation3 + $0x18] sm:$0xf]
        %v397 = vld [vmem:[#allocation3 + $0x1c] sm:$0xf]
        %v398 = vld [vmem:[#allocation3 + $0x20] sm:$0xf]
        %v399 = vld [vmem:[#allocation3 + $0x24] sm:$0xf]
        %v400 = vld [vmem:[#allocation3 + $0x28] sm:$0xf]
        %v401 = vld [vmem:[#allocation3 + $0x2c] sm:$0xf]
        %v402 = vld [vmem:[#allocation3 + $0x30] sm:$0xf]
        %v403 = vld [vmem:[#allocation3 + $0x34] sm:$0xf]
        %v404 = vld [vmem:[#allocation3 + $0x38] sm:$0xf]
        %v405 = vld [vmem:[#allocation3 + $0x3c] sm:$0xf]
        %v406 = vld [vmem:[#allocation3 + $0x40] sm:$0xf]
        %v407 = vld [vmem:[#allocation3 + $0x44] sm:$0xf]
        %v408 = vld [vmem:[#allocation3 + $0x48] sm:$0xf]
        %v409 = vld [vmem:[#allocation3 + $0x4c] sm:$0xf]
        %v410 = vld [vmem:[#allocation3 + $0x50] sm:$0xf]
        %v411 = vld [vmem:[#allocation3 + $0x54] sm:$0xf]
        %v412 = vld [vmem:[#allocation3 + $0x58] sm:$0xf]
        %v413 = vld [vmem:[#allocation3 + $0x5c] sm:$0xf]
        %v414 = vld [vmem:[#allocation3 + $0x60] sm:$0xf]
        %v415 = vld [vmem:[#allocation3 + $0x64] sm:$0xf]
        %v416 = vld [vmem:[#allocation3 + $0x68] sm:$0xf]
        %v417 = vld [vmem:[#allocation3 + $0x6c] sm:$0xf]
        %v418 = vld [vmem:[#allocation3 + $0x70] sm:$0xf]
        %v419 = vld [vmem:[#allocation3 + $0x74] sm:$0xf]
        %v420 = vld [vmem:[#allocation3 + $0x78] sm:$0xf]
        %v421 = vld [vmem:[#allocation3 + $0x7c] sm:$0xf]
        %v422 = vld [vmem:[#allocation3 + $0x80] sm:$0xf]
        %v423 = vld [vmem:[#allocation3 + $0x84] sm:$0xf]
        %v424 = vld [vmem:[#allocation3 + $0x88] sm:$0xf]
        %v425 = vld [vmem:[#allocation3 + $0x8c] sm:$0xf]
        %v426 = vld [vmem:[#allocation3 + $0x90] sm:$0xf]
        %v427 = vld [vmem:[#allocation3 + $0x94] sm:$0xf]
        %v428 = vld [vmem:[#allocation3 + $0x98] sm:$0xf]
        %v429 = vld [vmem:[#allocation3 + $0x9c] sm:$0xf]
        %v430 = vld [vmem:[#allocation3 + $0xa0] sm:$0xf]
        %v431 = vld [vmem:[#allocation3 + $0xa4] sm:$0xf]
        %v432 = vld [vmem:[#allocation3 + $0xa8] sm:$0xf]
        %v433 = vld [vmem:[#allocation3 + $0xac] sm:$0xf]
        %v434 = vld [vmem:[#allocation3 + $0xb0] sm:$0xf]
        %v435 = vld [vmem:[#allocation3 + $0xb4] sm:$0xf]
        %v436 = vld [vmem:[#allocation3 + $0xb8] sm:$0xf]
        %v437 = vld [vmem:[#allocation3 + $0xbc] sm:$0xf]
        %v438 = vld [vmem:[#allocation3 + $0xc0] sm:$0xf]
        %v439 = vld [vmem:[#allocation3 + $0xc4] sm:$0xf]
        %v440 = vld [vmem:[#allocation3 + $0xc8] sm:$0xf]
        %v441 = vld [vmem:[#allocation3 + $0xcc] sm:$0xf]
        %v442 = vld [vmem:[#allocation3 + $0xd0] sm:$0xf]
        %v443 = vld [vmem:[#allocation3 + $0xd4] sm:$0xf]
        %v444 = vld [vmem:[#allocation3 + $0xd8] sm:$0xf]
        %v445 = vld [vmem:[#allocation3 + $0xdc] sm:$0xf]
        %v446 = vld [vmem:[#allocation3 + $0xe0] sm:$0xf]
        %v447 = vld [vmem:[#allocation3 + $0xe4] sm:$0xf]
        %v448 = vld [vmem:[#allocation3 + $0xe8] sm:$0xf]
        %v449 = vld [vmem:[#allocation3 + $0xec] sm:$0xf]
        %v450 = vld [vmem:[#allocation3 + $0xf0] sm:$0xf]
        %v451 = vld [vmem:[#allocation3 + $0xf4] sm:$0xf]
        %v452 = vld [vmem:[#allocation3 + $0xf8] sm:$0xf]
        %v453 = vld [vmem:[#allocation3 + $0xfc] sm:$0xf]
        %v454 = vld [vmem:[%s225] sm:$0xf]
        %v455 = vld [vmem:[%s225 + $0x4] sm:$0xf]
        %v456 = vld [vmem:[%s225 + $0x8] sm:$0xf]
        %v457 = vld [vmem:[%s225 + $0xc] sm:$0xf]
        %v458 = vld [vmem:[%s225 + $0x10] sm:$0xf]
        %v459 = vld [vmem:[%s225 + $0x14] sm:$0xf]
        %v460 = vld [vmem:[%s225 + $0x18] sm:$0xf]
        %v461 = vld [vmem:[%s225 + $0x1c] sm:$0xf]
        %v462 = vld [vmem:[%s225 + $0x20] sm:$0xf]
        %v463 = vld [vmem:[%s225 + $0x24] sm:$0xf]
        %v464 = vld [vmem:[%s225 + $0x28] sm:$0xf]
        %v465 = vld [vmem:[%s225 + $0x2c] sm:$0xf]
        %v466 = vld [vmem:[%s225 + $0x30] sm:$0xf]
        %v467 = vld [vmem:[%s225 + $0x34] sm:$0xf]
        %v468 = vld [vmem:[%s225 + $0x38] sm:$0xf]
        %v469 = vld [vmem:[%s225 + $0x3c] sm:$0xf]
        %v534 = vunpack.c.l.b16 %v390
        %v535 = vunpack.c.l.b16 %v391
        %v536 = vunpack.c.l.b16 %v392
        %v537 = vunpack.c.l.b16 %v393
        %v538 = vunpack.c.l.b16 %v394
        %v539 = vunpack.c.l.b16 %v395
        %v540 = vunpack.c.l.b16 %v396
        %v541 = vunpack.c.l.b16 %v397
        %v542 = vunpack.c.l.b16 %v398
        %v543 = vunpack.c.l.b16 %v399
        %v544 = vunpack.c.l.b16 %v400
        %v545 = vunpack.c.l.b16 %v401
        %v546 = vunpack.c.l.b16 %v402
        %v547 = vunpack.c.l.b16 %v403
        %v548 = vunpack.c.l.b16 %v404
        %v549 = vunpack.c.l.b16 %v405
        %v550 = vunpack.c.l.b16 %v406
        %v551 = vunpack.c.l.b16 %v407
        %v552 = vunpack.c.l.b16 %v408
        %v553 = vunpack.c.l.b16 %v409
        %v554 = vunpack.c.l.b16 %v410
        %v555 = vunpack.c.l.b16 %v411
        %v556 = vunpack.c.l.b16 %v412
        %v557 = vunpack.c.l.b16 %v413
        %v558 = vunpack.c.l.b16 %v414
        %v559 = vunpack.c.l.b16 %v415
        %v560 = vunpack.c.l.b16 %v416
        %v561 = vunpack.c.l.b16 %v417
        %v562 = vunpack.c.l.b16 %v418
        %v563 = vunpack.c.l.b16 %v419
        %v564 = vunpack.c.l.b16 %v420
        %v565 = vunpack.c.l.b16 %v421
        %v566 = vunpack.c.l.b16 %v422
        %v567 = vunpack.c.l.b16 %v423
        %v568 = vunpack.c.l.b16 %v424
        %v569 = vunpack.c.l.b16 %v425
        %v570 = vunpack.c.l.b16 %v426
        %v571 = vunpack.c.l.b16 %v427
        %v572 = vunpack.c.l.b16 %v428
        %v573 = vunpack.c.l.b16 %v429
        %v574 = vunpack.c.l.b16 %v430
        %v575 = vunpack.c.l.b16 %v431
        %v576 = vunpack.c.l.b16 %v432
        %v577 = vunpack.c.l.b16 %v433
        %v578 = vunpack.c.l.b16 %v434
        %v579 = vunpack.c.l.b16 %v435
        %v580 = vunpack.c.l.b16 %v436
        %v581 = vunpack.c.l.b16 %v437
        %v582 = vunpack.c.l.b16 %v438
        %v583 = vunpack.c.l.b16 %v439
        %v584 = vunpack.c.l.b16 %v440
        %v585 = vunpack.c.l.b16 %v441
        %v586 = vunpack.c.l.b16 %v442
        %v587 = vunpack.c.l.b16 %v443
        %v588 = vunpack.c.l.b16 %v444
        %v589 = vunpack.c.l.b16 %v445
        %v590 = vunpack.c.l.b16 %v446
        %v591 = vunpack.c.l.b16 %v447
        %v592 = vunpack.c.l.b16 %v448
        %v593 = vunpack.c.l.b16 %v449
        %v594 = vunpack.c.l.b16 %v450
        %v595 = vunpack.c.l.b16 %v451
        %v596 = vunpack.c.l.b16 %v452
        %v597 = vunpack.c.l.b16 %v453
        %v598 = vpack.c.b16 %v535, %v534
        %v599 = vpack.c.b16 %v537, %v536
        %v600 = vpack.c.b16 %v539, %v538
        %v601 = vpack.c.b16 %v541, %v540
        %v602 = vpack.c.b16 %v543, %v542
        %v603 = vpack.c.b16 %v545, %v544
        %v604 = vpack.c.b16 %v547, %v546
        %v605 = vpack.c.b16 %v549, %v548
        %v606 = vpack.c.b16 %v551, %v550
        %v607 = vpack.c.b16 %v553, %v552
        %v608 = vpack.c.b16 %v555, %v554
        %v609 = vpack.c.b16 %v557, %v556
        %v610 = vpack.c.b16 %v559, %v558
        %v611 = vpack.c.b16 %v561, %v560
        %v612 = vpack.c.b16 %v563, %v562
        %v613 = vpack.c.b16 %v565, %v564
        %v614 = vpack.c.b16 %v567, %v566
        %v615 = vpack.c.b16 %v569, %v568
        %v616 = vpack.c.b16 %v571, %v570
        %v617 = vpack.c.b16 %v573, %v572
        %v618 = vpack.c.b16 %v575, %v574
        %v619 = vpack.c.b16 %v577, %v576
        %v620 = vpack.c.b16 %v579, %v578
        %v621 = vpack.c.b16 %v581, %v580
        %v622 = vpack.c.b16 %v583, %v582
        %v623 = vpack.c.b16 %v585, %v584
        %v624 = vpack.c.b16 %v587, %v586
        %v625 = vpack.c.b16 %v589, %v588
        %v626 = vpack.c.b16 %v591, %v590
        %v627 = vpack.c.b16 %v593, %v592
        %v628 = vpack.c.b16 %v595, %v594
        %v629 = vpack.c.b16 %v597, %v596
        %v678 = vunpack.c.l.b16 %v454
        %v679 = vunpack.c.l.b16 %v455
        %v680 = vunpack.c.l.b16 %v456
        %v681 = vunpack.c.l.b16 %v457
        %v682 = vunpack.c.l.b16 %v458
        %v683 = vunpack.c.l.b16 %v459
        %v684 = vunpack.c.l.b16 %v460
        %v685 = vunpack.c.l.b16 %v461
        %v686 = vunpack.c.l.b16 %v462
        %v687 = vunpack.c.l.b16 %v463
        %v688 = vunpack.c.l.b16 %v464
        %v689 = vunpack.c.l.b16 %v465
        %v690 = vunpack.c.l.b16 %v466
        %v691 = vunpack.c.l.b16 %v467
        %v692 = vunpack.c.l.b16 %v468
        %v693 = vunpack.c.l.b16 %v469
        %v694 = vpack.c.b16 %v679, %v678
        %v695 = vpack.c.b16 %v681, %v680
        %v696 = vpack.c.b16 %v683, %v682
        %v697 = vpack.c.b16 %v685, %v684
        %v698 = vpack.c.b16 %v687, %v686
        %v699 = vpack.c.b16 %v689, %v688
        %v700 = vpack.c.b16 %v691, %v690
        %v701 = vpack.c.b16 %v693, %v692
        %710 = vmatprep.subr.bf16.mxu0 0
        %711 = vmatpush1.bf16.msra.mxu0 %v694
        %712 = vmatprep.subr.bf16.mxu0 0
        %713 = vmatpush1.bf16.msra.mxu0 %v695
        %714 = vmatprep.subr.bf16.mxu0 0
        %715 = vmatpush1.bf16.msra.mxu0 %v696
        %716 = vmatprep.subr.bf16.mxu0 0
        %717 = vmatpush1.bf16.msra.mxu0 %v697
        %718 = vmatprep.subr.bf16.mxu0 0
        %719 = vmatpush1.bf16.msra.mxu0 %v698
        %720 = vmatprep.subr.bf16.mxu0 0
        %721 = vmatpush1.bf16.msra.mxu0 %v699
        %722 = vmatprep.subr.bf16.mxu0 0
        %723 = vmatpush1.bf16.msra.mxu0 %v700
        %724 = vmatprep.subr.bf16.mxu0 0
        %725 = vmatpush1.bf16.msra.mxu0 %v701
        %726 = vmatprep.subr.bf16.mxu0 0
        %727 = vmatpush1.bf16.msra.mxu0 0
        %728 = vmatprep.subr.bf16.mxu0 0
        %729 = vmatpush1.bf16.msra.mxu0 0
        %730 = vmatprep.subr.bf16.mxu0 0
        %731 = vmatpush1.bf16.msra.mxu0 0
        %732 = vmatprep.subr.bf16.mxu0 0
        %733 = vmatpush1.bf16.msra.mxu0 0
        %734 = vmatprep.subr.bf16.mxu0 0
        %735 = vmatpush1.bf16.msra.mxu0 0
        %736 = vmatprep.subr.bf16.mxu0 0
        %737 = vmatpush1.bf16.msra.mxu0 0
        %738 = vmatprep.subr.bf16.mxu0 0
        %739 = vmatpush1.bf16.msra.mxu0 0
        %740 = vmatprep.subr.bf16.mxu0 0
        %741 = vmatpush1.bf16.msra.mxu0 0
        %742 = vmatprep.mubr.bf16.mxu0 0
        %743 = vmatmul.mubr.bf16.gmra.mrb[0].mxu0 %v598
        %v744 = vpop.f32.mrb[0].mxu0
        %v745 = vadd.f32 0.0, %v744
        %v746 = vpop.f32.mrb[0].mxu0
        %v747 = vpop.f32.mrb[0].mxu0
        %v748 = vadd.f32 0.0, %v747
        %v749 = vpop.f32.mrb[0].mxu0
        %750 = vmatprep.mubr.bf16.mxu0 0
        %751 = vmatmul.mubr.bf16.gmra.mrb[0].mxu0 %v599
        %v752 = vpop.f32.mrb[0].mxu0
        %v753 = vadd.f32 0.0, %v752
        %v754 = vpop.f32.mrb[0].mxu0
        %v755 = vpop.f32.mrb[0].mxu0
        %v756 = vadd.f32 0.0, %v755
        %v757 = vpop.f32.mrb[0].mxu0
        %758 = vmatprep.mubr.bf16.mxu0 0
        %759 = vmatmul.mubr.bf16.gmra.mrb[0].mxu0 %v600
        %v760 = vpop.f32.mrb[0].mxu0
        %v761 = vadd.f32 0.0, %v760
        %v762 = vpop.f32.mrb[0].mxu0
        %v763 = vpop.f32.mrb[0].mxu0
        %v764 = vadd.f32 0.0, %v763
        %v765 = vpop.f32.mrb[0].mxu0
        %766 = vmatprep.mubr.bf16.mxu0 0
        %767 = vmatmul.mubr.bf16.gmra.mrb[0].mxu0 %v601
        %v768 = vpop.f32.mrb[0].mxu0
        %v769 = vadd.f32 0.0, %v768
        %v770 = vpop.f32.mrb[0].mxu0
        %v771 = vpop.f32.mrb[0].mxu0
        %v772 = vadd.f32 0.0, %v771
        %v773 = vpop.f32.mrb[0].mxu0
        %774 = vmatprep.mubr.bf16.mxu0 0
        %775 = vmatmul.mubr.bf16.gmra.mrb[0].mxu0 %v602
        %v776 = vpop.f32.mrb[0].mxu0
        %v777 = vadd.f32 0.0, %v776
        %v778 = vpop.f32.mrb[0].mxu0
        %v779 = vpop.f32.mrb[0].mxu0
        %v780 = vadd.f32 0.0, %v779
        %v781 = vpop.f32.mrb[0].mxu0
        %782 = vmatprep.mubr.bf16.mxu0 0
        %783 = vmatmul.mubr.bf16.gmra.mrb[0].mxu0 %v603
        %v784 = vpop.f32.mrb[0].mxu0
        %v785 = vadd.f32 0.0, %v784
        %v786 = vpop.f32.mrb[0].mxu0
        %v787 = vpop.f32.mrb[0].mxu0
        %v788 = vadd.f32 0.0, %v787
        %v789 = vpop.f32.mrb[0].mxu0
        %790 = vmatprep.mubr.bf16.mxu0 0
        %791 = vmatmul.mubr.bf16.gmra.mrb[0].mxu0 %v604
        %v792 = vpop.f32.mrb[0].mxu0
        %v793 = vadd.f32 0.0, %v792
        %v794 = vpop.f32.mrb[0].mxu0
        %v795 = vpop.f32.mrb[0].mxu0
        %v796 = vadd.f32 0.0, %v795
        %v797 = vpop.f32.mrb[0].mxu0
        %798 = vmatprep.mubr.bf16.mxu0 0
        %799 = vmatmul.mubr.bf16.gmra.mrb[0].mxu0 %v605
        %v800 = vpop.f32.mrb[0].mxu0
        %v801 = vadd.f32 0.0, %v800
        %v802 = vpop.f32.mrb[0].mxu0
        %v803 = vpop.f32.mrb[0].mxu0
        %v804 = vadd.f32 0.0, %v803
        %v805 = vpop.f32.mrb[0].mxu0
        %806 = vmatprep.mubr.bf16.mxu0 0
        %807 = vmatmul.mubr.bf16.gmra.mrb[0].mxu0 %v606
        %v808 = vpop.f32.mrb[0].mxu0
        %v809 = vadd.f32 0.0, %v808
        %v810 = vpop.f32.mrb[0].mxu0
        %v811 = vpop.f32.mrb[0].mxu0
        %v812 = vadd.f32 0.0, %v811
        %v813 = vpop.f32.mrb[0].mxu0
        %814 = vmatprep.mubr.bf16.mxu0 0
        %815 = vmatmul.mubr.bf16.gmra.mrb[0].mxu0 %v607
        %v816 = vpop.f32.mrb[0].mxu0
        %v817 = vadd.f32 0.0, %v816
        %v818 = vpop.f32.mrb[0].mxu0
        %v819 = vpop.f32.mrb[0].mxu0
        %v820 = vadd.f32 0.0, %v819
        %v821 = vpop.f32.mrb[0].mxu0
        %822 = vmatprep.mubr.bf16.mxu0 0
        %823 = vmatmul.mubr.bf16.gmra.mrb[0].mxu0 %v608
        %v824 = vpop.f32.mrb[0].mxu0
        %v825 = vadd.f32 0.0, %v824
        %v826 = vpop.f32.mrb[0].mxu0
        %v827 = vpop.f32.mrb[0].mxu0
        %v828 = vadd.f32 0.0, %v827
        %v829 = vpop.f32.mrb[0].mxu0
        %830 = vmatprep.mubr.bf16.mxu0 0
        %831 = vmatmul.mubr.bf16.gmra.mrb[0].mxu0 %v609
        %v832 = vpop.f32.mrb[0].mxu0
        %v833 = vadd.f32 0.0, %v832
        %v834 = vpop.f32.mrb[0].mxu0
        %v835 = vpop.f32.mrb[0].mxu0
        %v836 = vadd.f32 0.0, %v835
        %v837 = vpop.f32.mrb[0].mxu0
        %838 = vmatprep.mubr.bf16.mxu0 0
        %839 = vmatmul.mubr.bf16.gmra.mrb[0].mxu0 %v610
        %v840 = vpop.f32.mrb[0].mxu0
        %v841 = vadd.f32 0.0, %v840
        %v842 = vpop.f32.mrb[0].mxu0
        %v843 = vpop.f32.mrb[0].mxu0
        %v844 = vadd.f32 0.0, %v843
        %v845 = vpop.f32.mrb[0].mxu0
        %846 = vmatprep.mubr.bf16.mxu0 0
        %847 = vmatmul.mubr.bf16.gmra.mrb[0].mxu0 %v611
        %v848 = vpop.f32.mrb[0].mxu0
        %v849 = vadd.f32 0.0, %v848
        %v850 = vpop.f32.mrb[0].mxu0
        %v851 = vpop.f32.mrb[0].mxu0
        %v852 = vadd.f32 0.0, %v851
        %v853 = vpop.f32.mrb[0].mxu0
        %854 = vmatprep.mubr.bf16.mxu0 0
        %855 = vmatmul.mubr.bf16.gmra.mrb[0].mxu0 %v612
        %v856 = vpop.f32.mrb[0].mxu0
        %v857 = vadd.f32 0.0, %v856
        %v858 = vpop.f32.mrb[0].mxu0
        %v859 = vpop.f32.mrb[0].mxu0
        %v860 = vadd.f32 0.0, %v859
        %v861 = vpop.f32.mrb[0].mxu0
        %862 = vmatprep.mubr.bf16.mxu0 0
        %863 = vmatmul.mubr.bf16.gmra.mrb[0].mxu0 %v613
        %v864 = vpop.f32.mrb[0].mxu0
        %v865 = vadd.f32 0.0, %v864
        %v866 = vpop.f32.mrb[0].mxu0
        %v867 = vpop.f32.mrb[0].mxu0
        %v868 = vadd.f32 0.0, %v867
        %v869 = vpop.f32.mrb[0].mxu0
        %870 = vmatprep.mubr.bf16.mxu0 0
        %871 = vmatmul.mubr.bf16.gmra.mrb[0].mxu0 %v614
        %v872 = vpop.f32.mrb[0].mxu0
        %v873 = vadd.f32 0.0, %v872
        %v874 = vpop.f32.mrb[0].mxu0
        %v875 = vpop.f32.mrb[0].mxu0
        %v876 = vadd.f32 0.0, %v875
        %v877 = vpop.f32.mrb[0].mxu0
        %878 = vmatprep.mubr.bf16.mxu0 0
        %879 = vmatmul.mubr.bf16.gmra.mrb[0].mxu0 %v615
        %v880 = vpop.f32.mrb[0].mxu0
        %v881 = vadd.f32 0.0, %v880
        %v882 = vpop.f32.mrb[0].mxu0
        %v883 = vpop.f32.mrb[0].mxu0
        %v884 = vadd.f32 0.0, %v883
        %v885 = vpop.f32.mrb[0].mxu0
        %886 = vmatprep.mubr.bf16.mxu0 0
        %887 = vmatmul.mubr.bf16.gmra.mrb[0].mxu0 %v616
        %v888 = vpop.f32.mrb[0].mxu0
        %v889 = vadd.f32 0.0, %v888
        %v890 = vpop.f32.mrb[0].mxu0
        %v891 = vpop.f32.mrb[0].mxu0
        %v892 = vadd.f32 0.0, %v891
        %v893 = vpop.f32.mrb[0].mxu0
        %894 = vmatprep.mubr.bf16.mxu0 0
        %895 = vmatmul.mubr.bf16.gmra.mrb[0].mxu0 %v617
        %v896 = vpop.f32.mrb[0].mxu0
        %v897 = vadd.f32 0.0, %v896
        %v898 = vpop.f32.mrb[0].mxu0
        %v899 = vpop.f32.mrb[0].mxu0
        %v900 = vadd.f32 0.0, %v899
        %v901 = vpop.f32.mrb[0].mxu0
        %902 = vmatprep.mubr.bf16.mxu0 0
        %903 = vmatmul.mubr.bf16.gmra.mrb[0].mxu0 %v618
        %v904 = vpop.f32.mrb[0].mxu0
        %v905 = vadd.f32 0.0, %v904
        %v906 = vpop.f32.mrb[0].mxu0
        %v907 = vpop.f32.mrb[0].mxu0
        %v908 = vadd.f32 0.0, %v907
        %v909 = vpop.f32.mrb[0].mxu0
        %910 = vmatprep.mubr.bf16.mxu0 0
        %911 = vmatmul.mubr.bf16.gmra.mrb[0].mxu0 %v619
        %v912 = vpop.f32.mrb[0].mxu0
        %v913 = vadd.f32 0.0, %v912
        %v914 = vpop.f32.mrb[0].mxu0
        %v915 = vpop.f32.mrb[0].mxu0
        %v916 = vadd.f32 0.0, %v915
        %v917 = vpop.f32.mrb[0].mxu0
        %918 = vmatprep.mubr.bf16.mxu0 0
        %919 = vmatmul.mubr.bf16.gmra.mrb[0].mxu0 %v620
        %v920 = vpop.f32.mrb[0].mxu0
        %v921 = vadd.f32 0.0, %v920
        %v922 = vpop.f32.mrb[0].mxu0
        %v923 = vpop.f32.mrb[0].mxu0
        %v924 = vadd.f32 0.0, %v923
        %v925 = vpop.f32.mrb[0].mxu0
        %926 = vmatprep.mubr.bf16.mxu0 0
        %927 = vmatmul.mubr.bf16.gmra.mrb[0].mxu0 %v621
        %v928 = vpop.f32.mrb[0].mxu0
        %v929 = vadd.f32 0.0, %v928
        %v930 = vpop.f32.mrb[0].mxu0
        %v931 = vpop.f32.mrb[0].mxu0
        %v932 = vadd.f32 0.0, %v931
        %v933 = vpop.f32.mrb[0].mxu0
        %934 = vmatprep.mubr.bf16.mxu0 0
        %935 = vmatmul.mubr.bf16.gmra.mrb[0].mxu0 %v622
        %v936 = vpop.f32.mrb[0].mxu0
        %v937 = vadd.f32 0.0, %v936
        %v938 = vpop.f32.mrb[0].mxu0
        %v939 = vpop.f32.mrb[0].mxu0
        %v940 = vadd.f32 0.0, %v939
        %v941 = vpop.f32.mrb[0].mxu0
        %942 = vmatprep.mubr.bf16.mxu0 0
        %943 = vmatmul.mubr.bf16.gmra.mrb[0].mxu0 %v623
        %v944 = vpop.f32.mrb[0].mxu0
        %v945 = vadd.f32 0.0, %v944
        %v946 = vpop.f32.mrb[0].mxu0
        %v947 = vpop.f32.mrb[0].mxu0
        %v948 = vadd.f32 0.0, %v947
        %v949 = vpop.f32.mrb[0].mxu0
        %950 = vmatprep.mubr.bf16.mxu0 0
        %951 = vmatmul.mubr.bf16.gmra.mrb[0].mxu0 %v624
        %v952 = vpop.f32.mrb[0].mxu0
        %v953 = vadd.f32 0.0, %v952
        %v954 = vpop.f32.mrb[0].mxu0
        %v955 = vpop.f32.mrb[0].mxu0
        %v956 = vadd.f32 0.0, %v955
        %v957 = vpop.f32.mrb[0].mxu0
        %958 = vmatprep.mubr.bf16.mxu0 0
        %959 = vmatmul.mubr.bf16.gmra.mrb[0].mxu0 %v625
        %v960 = vpop.f32.mrb[0].mxu0
        %v961 = vadd.f32 0.0, %v960
        %v962 = vpop.f32.mrb[0].mxu0
        %v963 = vpop.f32.mrb[0].mxu0
        %v964 = vadd.f32 0.0, %v963
        %v965 = vpop.f32.mrb[0].mxu0
        %966 = vmatprep.mubr.bf16.mxu0 0
        %967 = vmatmul.mubr.bf16.gmra.mrb[0].mxu0 %v626
        %v968 = vpop.f32.mrb[0].mxu0
        %v969 = vadd.f32 0.0, %v968
        %v970 = vpop.f32.mrb[0].mxu0
        %v971 = vpop.f32.mrb[0].mxu0
        %v972 = vadd.f32 0.0, %v971
        %v973 = vpop.f32.mrb[0].mxu0
        %974 = vmatprep.mubr.bf16.mxu0 0
        %975 = vmatmul.mubr.bf16.gmra.mrb[0].mxu0 %v627
        %v976 = vpop.f32.mrb[0].mxu0
        %v977 = vadd.f32 0.0, %v976
        %v978 = vpop.f32.mrb[0].mxu0
        %v979 = vpop.f32.mrb[0].mxu0
        %v980 = vadd.f32 0.0, %v979
        %v981 = vpop.f32.mrb[0].mxu0
        %982 = vmatprep.mubr.bf16.mxu0 0
        %983 = vmatmul.mubr.bf16.gmra.mrb[0].mxu0 %v628
        %v984 = vpop.f32.mrb[0].mxu0
        %v985 = vadd.f32 0.0, %v984
        %v986 = vpop.f32.mrb[0].mxu0
        %v987 = vpop.f32.mrb[0].mxu0
        %v988 = vadd.f32 0.0, %v987
        %v989 = vpop.f32.mrb[0].mxu0
        %990 = vmatprep.mubr.bf16.mxu0 0
        %991 = vmatmul.mubr.bf16.gmra.mrb[0].mxu0 %v629
        %v992 = vpop.f32.mrb[0].mxu0
        %v993 = vadd.f32 0.0, %v992
        %v994 = vpop.f32.mrb[0].mxu0
        %v995 = vpop.f32.mrb[0].mxu0
        %v996 = vadd.f32 0.0, %v995
        %v997 = vpop.f32.mrb[0].mxu0
        %998 = vdwg.mxu0
        %v999 = vadd.f32 %v326, %v745
        %v1000 = vadd.f32 %v327, %v748
        %v1001 = vadd.f32 %v328, %v753
        %v1002 = vadd.f32 %v329, %v756
        %v1003 = vadd.f32 %v330, %v761
        %v1004 = vadd.f32 %v331, %v764
        %v1005 = vadd.f32 %v332, %v769
        %v1006 = vadd.f32 %v333, %v772
        %v1007 = vadd.f32 %v334, %v777
        %v1008 = vadd.f32 %v335, %v780
        %v1009 = vadd.f32 %v336, %v785
        %v1010 = vadd.f32 %v337, %v788
        %v1011 = vadd.f32 %v338, %v793
        %v1012 = vadd.f32 %v339, %v796
        %v1013 = vadd.f32 %v340, %v801
        %v1014 = vadd.f32 %v341, %v804
        %v1015 = vadd.f32 %v342, %v809
        %v1016 = vadd.f32 %v343, %v812
        %v1017 = vadd.f32 %v344, %v817
        %v1018 = vadd.f32 %v345, %v820
        %v1019 = vadd.f32 %v346, %v825
        %v1020 = vadd.f32 %v347, %v828
        %v1021 = vadd.f32 %v348, %v833
        %v1022 = vadd.f32 %v349, %v836
        %v1023 = vadd.f32 %v350, %v841
        %v1024 = vadd.f32 %v351, %v844
        %v1025 = vadd.f32 %v352, %v849
        %v1026 = vadd.f32 %v353, %v852
        %v1027 = vadd.f32 %v354, %v857
        %v1028 = vadd.f32 %v355, %v860
        %v1029 = vadd.f32 %v356, %v865
        %v1030 = vadd.f32 %v357, %v868
        %v1031 = vadd.f32 %v358, %v873
        %v1032 = vadd.f32 %v359, %v876
        %v1033 = vadd.f32 %v360, %v881
        %v1034 = vadd.f32 %v361, %v884
        %v1035 = vadd.f32 %v362, %v889
        %v1036 = vadd.f32 %v363, %v892
        %v1037 = vadd.f32 %v364, %v897
        %v1038 = vadd.f32 %v365, %v900
        %v1039 = vadd.f32 %v366, %v905
        %v1040 = vadd.f32 %v367, %v908
        %v1041 = vadd.f32 %v368, %v913
        %v1042 = vadd.f32 %v369, %v916
        %v1043 = vadd.f32 %v370, %v921
        %v1044 = vadd.f32 %v371, %v924
        %v1045 = vadd.f32 %v372, %v929
        %v1046 = vadd.f32 %v373, %v932
        %v1047 = vadd.f32 %v374, %v937
        %v1048 = vadd.f32 %v375, %v940
        %v1049 = vadd.f32 %v376, %v945
        %v1050 = vadd.f32 %v377, %v948
        %v1051 = vadd.f32 %v378, %v953
        %v1052 = vadd.f32 %v379, %v956
        %v1053 = vadd.f32 %v380, %v961
        %v1054 = vadd.f32 %v381, %v964
        %v1055 = vadd.f32 %v382, %v969
        %v1056 = vadd.f32 %v383, %v972
        %v1057 = vadd.f32 %v384, %v977
        %v1058 = vadd.f32 %v385, %v980
        %v1059 = vadd.f32 %v386, %v985
        %v1060 = vadd.f32 %v387, %v988
        %v1061 = vadd.f32 %v388, %v993
        %v1062 = vadd.f32 %v389, %v996
        %1063 = vst [vmem:[#allocation2] sm:$0xff] %v999
        %1064 = vst [vmem:[#allocation2 + $0x8] sm:$0xff] %v1000
        %1065 = vst [vmem:[#allocation2 + $0x10] sm:$0xff] %v1001
        %1066 = vst [vmem:[#allocation2 + $0x18] sm:$0xff] %v1002
        %1067 = vst [vmem:[#allocation2 + $0x20] sm:$0xff] %v1003
        %1068 = vst [vmem:[#allocation2 + $0x28] sm:$0xff] %v1004
        %1069 = vst [vmem:[#allocation2 + $0x30] sm:$0xff] %v1005
        %1070 = vst [vmem:[#allocation2 + $0x38] sm:$0xff] %v1006
        %1071 = vst [vmem:[#allocation2 + $0x40] sm:$0xff] %v1007
        %1072 = vst [vmem:[#allocation2 + $0x48] sm:$0xff] %v1008
        %1073 = vst [vmem:[#allocation2 + $0x50] sm:$0xff] %v1009
        %1074 = vst [vmem:[#allocation2 + $0x58] sm:$0xff] %v1010
        %1075 = vst [vmem:[#allocation2 + $0x60] sm:$0xff] %v1011
        %1076 = vst [vmem:[#allocation2 + $0x68] sm:$0xff] %v1012
        %1077 = vst [vmem:[#allocation2 + $0x70] sm:$0xff] %v1013
        %1078 = vst [vmem:[#allocation2 + $0x78] sm:$0xff] %v1014
        %1079 = vst [vmem:[#allocation2 + $0x80] sm:$0xff] %v1015
        %1080 = vst [vmem:[#allocation2 + $0x88] sm:$0xff] %v1016
        %1081 = vst [vmem:[#allocation2 + $0x90] sm:$0xff] %v1017
        %1082 = vst [vmem:[#allocation2 + $0x98] sm:$0xff] %v1018
        %1083 = vst [vmem:[#allocation2 + $0xa0] sm:$0xff] %v1019
        %1084 = vst [vmem:[#allocation2 + $0xa8] sm:$0xff] %v1020
        %1085 = vst [vmem:[#allocation2 + $0xb0] sm:$0xff] %v1021
        %1086 = vst [vmem:[#allocation2 + $0xb8] sm:$0xff] %v1022
        %1087 = vst [vmem:[#allocation2 + $0xc0] sm:$0xff] %v1023
        %1088 = vst [vmem:[#allocation2 + $0xc8] sm:$0xff] %v1024
        %1089 = vst [vmem:[#allocation2 + $0xd0] sm:$0xff] %v1025
        %1090 = vst [vmem:[#allocation2 + $0xd8] sm:$0xff] %v1026
        %1091 = vst [vmem:[#allocation2 + $0xe0] sm:$0xff] %v1027
        %1092 = vst [vmem:[#allocation2 + $0xe8] sm:$0xff] %v1028
        %1093 = vst [vmem:[#allocation2 + $0xf0] sm:$0xff] %v1029
        %1094 = vst [vmem:[#allocation2 + $0xf8] sm:$0xff] %v1030
        %1095 = vst [vmem:[#allocation2 + $0x100] sm:$0xff] %v1031
        %1096 = vst [vmem:[#allocation2 + $0x108] sm:$0xff] %v1032
        %1097 = vst [vmem:[#allocation2 + $0x110] sm:$0xff] %v1033
        %1098 = vst [vmem:[#allocation2 + $0x118] sm:$0xff] %v1034
        %1099 = vst [vmem:[#allocation2 + $0x120] sm:$0xff] %v1035
        %1100 = vst [vmem:[#allocation2 + $0x128] sm:$0xff] %v1036
        %1101 = vst [vmem:[#allocation2 + $0x130] sm:$0xff] %v1037
        %1102 = vst [vmem:[#allocation2 + $0x138] sm:$0xff] %v1038
        %1103 = vst [vmem:[#allocation2 + $0x140] sm:$0xff] %v1039
        %1104 = vst [vmem:[#allocation2 + $0x148] sm:$0xff] %v1040
        %1105 = vst [vmem:[#allocation2 + $0x150] sm:$0xff] %v1041
        %1106 = vst [vmem:[#allocation2 + $0x158] sm:$0xff] %v1042
        %1107 = vst [vmem:[#allocation2 + $0x160] sm:$0xff] %v1043
        %1108 = vst [vmem:[#allocation2 + $0x168] sm:$0xff] %v1044
        %1109 = vst [vmem:[#allocation2 + $0x170] sm:$0xff] %v1045
        %1110 = vst [vmem:[#allocation2 + $0x178] sm:$0xff] %v1046
        %1111 = vst [vmem:[#allocation2 + $0x180] sm:$0xff] %v1047
        %1112 = vst [vmem:[#allocation2 + $0x188] sm:$0xff] %v1048
        %1113 = vst [vmem:[#allocation2 + $0x190] sm:$0xff] %v1049
        %1114 = vst [vmem:[#allocation2 + $0x198] sm:$0xff] %v1050
        %1115 = vst [vmem:[#allocation2 + $0x1a0] sm:$0xff] %v1051
        %1116 = vst [vmem:[#allocation2 + $0x1a8] sm:$0xff] %v1052
        %1117 = vst [vmem:[#allocation2 + $0x1b0] sm:$0xff] %v1053
        %1118 = vst [vmem:[#allocation2 + $0x1b8] sm:$0xff] %v1054
        %1119 = vst [vmem:[#allocation2 + $0x1c0] sm:$0xff] %v1055
        %1120 = vst [vmem:[#allocation2 + $0x1c8] sm:$0xff] %v1056
        %1121 = vst [vmem:[#allocation2 + $0x1d0] sm:$0xff] %v1057
        %1122 = vst [vmem:[#allocation2 + $0x1d8] sm:$0xff] %v1058
        %1123 = vst [vmem:[#allocation2 + $0x1e0] sm:$0xff] %v1059
        %1124 = vst [vmem:[#allocation2 + $0x1e8] sm:$0xff] %v1060
        %1125 = vst [vmem:[#allocation2 + $0x1f0] sm:$0xff] %v1061
        %1126 = vst [vmem:[#allocation2 + $0x1f8] sm:$0xff] %v1062
        // Predicated region
        $region45: #{tpu_custom_call.1} parent=31 // pred_check
          %p1127 = pneg %p258
        $region46: #{tpu_custom_call.1} parent=31 // pred_check_branch
          %1129 = sbr.rel (%p1127) target = $region48
        $region47: #{tpu_custom_call.1} parent=31 // pred_region
          %v1130 = vld [vmem:[#allocation2] sm:$0xff]
          %v1131 = vld [vmem:[#allocation2 + $0x8] sm:$0xff]
          %v1132 = vld [vmem:[#allocation2 + $0x10] sm:$0xff]
          %v1133 = vld [vmem:[#allocation2 + $0x18] sm:$0xff]
          %v1134 = vld [vmem:[#allocation2 + $0x20] sm:$0xff]
          %v1135 = vld [vmem:[#allocation2 + $0x28] sm:$0xff]
          %v1136 = vld [vmem:[#allocation2 + $0x30] sm:$0xff]
          %v1137 = vld [vmem:[#allocation2 + $0x38] sm:$0xff]
          %v1138 = vld [vmem:[#allocation2 + $0x40] sm:$0xff]
          %v1139 = vld [vmem:[#allocation2 + $0x48] sm:$0xff]
          %v1140 = vld [vmem:[#allocation2 + $0x50] sm:$0xff]
          %v1141 = vld [vmem:[#allocation2 + $0x58] sm:$0xff]
          %v1142 = vld [vmem:[#allocation2 + $0x60] sm:$0xff]
          %v1143 = vld [vmem:[#allocation2 + $0x68] sm:$0xff]
          %v1144 = vld [vmem:[#allocation2 + $0x70] sm:$0xff]
          %v1145 = vld [vmem:[#allocation2 + $0x78] sm:$0xff]
          %v1146 = vld [vmem:[#allocation2 + $0x80] sm:$0xff]
          %v1147 = vld [vmem:[#allocation2 + $0x88] sm:$0xff]
          %v1148 = vld [vmem:[#allocation2 + $0x90] sm:$0xff]
          %v1149 = vld [vmem:[#allocation2 + $0x98] sm:$0xff]
          %v1150 = vld [vmem:[#allocation2 + $0xa0] sm:$0xff]
          %v1151 = vld [vmem:[#allocation2 + $0xa8] sm:$0xff]
          %v1152 = vld [vmem:[#allocation2 + $0xb0] sm:$0xff]
          %v1153 = vld [vmem:[#allocation2 + $0xb8] sm:$0xff]
          %v1154 = vld [vmem:[#allocation2 + $0xc0] sm:$0xff]
          %v1155 = vld [vmem:[#allocation2 + $0xc8] sm:$0xff]
          %v1156 = vld [vmem:[#allocation2 + $0xd0] sm:$0xff]
          %v1157 = vld [vmem:[#allocation2 + $0xd8] sm:$0xff]
          %v1158 = vld [vmem:[#allocation2 + $0xe0] sm:$0xff]
          %v1159 = vld [vmem:[#allocation2 + $0xe8] sm:$0xff]
          %v1160 = vld [vmem:[#allocation2 + $0xf0] sm:$0xff]
          %v1161 = vld [vmem:[#allocation2 + $0xf8] sm:$0xff]
          %v1162 = vld [vmem:[#allocation2 + $0x100] sm:$0xff]
          %v1163 = vld [vmem:[#allocation2 + $0x108] sm:$0xff]
          %v1164 = vld [vmem:[#allocation2 + $0x110] sm:$0xff]
          %v1165 = vld [vmem:[#allocation2 + $0x118] sm:$0xff]
          %v1166 = vld [vmem:[#allocation2 + $0x120] sm:$0xff]
          %v1167 = vld [vmem:[#allocation2 + $0x128] sm:$0xff]
          %v1168 = vld [vmem:[#allocation2 + $0x130] sm:$0xff]
          %v1169 = vld [vmem:[#allocation2 + $0x138] sm:$0xff]
          %v1170 = vld [vmem:[#allocation2 + $0x140] sm:$0xff]
          %v1171 = vld [vmem:[#allocation2 + $0x148] sm:$0xff]
          %v1172 = vld [vmem:[#allocation2 + $0x150] sm:$0xff]
          %v1173 = vld [vmem:[#allocation2 + $0x158] sm:$0xff]
          %v1174 = vld [vmem:[#allocation2 + $0x160] sm:$0xff]
          %v1175 = vld [vmem:[#allocation2 + $0x168] sm:$0xff]
          %v1176 = vld [vmem:[#allocation2 + $0x170] sm:$0xff]
          %v1177 = vld [vmem:[#allocation2 + $0x178] sm:$0xff]
          %v1178 = vld [vmem:[#allocation2 + $0x180] sm:$0xff]
          %v1179 = vld [vmem:[#allocation2 + $0x188] sm:$0xff]
          %v1180 = vld [vmem:[#allocation2 + $0x190] sm:$0xff]
          %v1181 = vld [vmem:[#allocation2 + $0x198] sm:$0xff]
          %v1182 = vld [vmem:[#allocation2 + $0x1a0] sm:$0xff]
          %v1183 = vld [vmem:[#allocation2 + $0x1a8] sm:$0xff]
          %v1184 = vld [vmem:[#allocation2 + $0x1b0] sm:$0xff]
          %v1185 = vld [vmem:[#allocation2 + $0x1b8] sm:$0xff]
          %v1186 = vld [vmem:[#allocation2 + $0x1c0] sm:$0xff]
          %v1187 = vld [vmem:[#allocation2 + $0x1c8] sm:$0xff]
          %v1188 = vld [vmem:[#allocation2 + $0x1d0] sm:$0xff]
          %v1189 = vld [vmem:[#allocation2 + $0x1d8] sm:$0xff]
          %v1190 = vld [vmem:[#allocation2 + $0x1e0] sm:$0xff]
          %v1191 = vld [vmem:[#allocation2 + $0x1e8] sm:$0xff]
          %v1192 = vld [vmem:[#allocation2 + $0x1f0] sm:$0xff]
          %v1193 = vld [vmem:[#allocation2 + $0x1f8] sm:$0xff]
          %v1194 = vld [vmem:[%s255] sm:$0x1]
          %v1196 = vlaneseq
          %v1197 = vshrl.u32 %v1196, 7
          %v1198 = vsub.s32 0, %v1197
          %v1199 = vrot.slane %v1194, %v1198
          %v1201 = vadd.f32 %v1130, %v1199
          %v1202 = vadd.f32 %v1131, %v1199
          %v1203 = vadd.f32 %v1132, %v1199
          %v1204 = vadd.f32 %v1133, %v1199
          %v1205 = vadd.f32 %v1134, %v1199
          %v1206 = vadd.f32 %v1135, %v1199
          %v1207 = vadd.f32 %v1136, %v1199
          %v1208 = vadd.f32 %v1137, %v1199
          %v1209 = vadd.f32 %v1138, %v1199
          %v1210 = vadd.f32 %v1139, %v1199
          %v1211 = vadd.f32 %v1140, %v1199
          %v1212 = vadd.f32 %v1141, %v1199
          %v1213 = vadd.f32 %v1142, %v1199
          %v1214 = vadd.f32 %v1143, %v1199
          %v1215 = vadd.f32 %v1144, %v1199
          %v1216 = vadd.f32 %v1145, %v1199
          %v1217 = vadd.f32 %v1146, %v1199
          %v1218 = vadd.f32 %v1147, %v1199
          %v1219 = vadd.f32 %v1148, %v1199
          %v1220 = vadd.f32 %v1149, %v1199
          %v1221 = vadd.f32 %v1150, %v1199
          %v1222 = vadd.f32 %v1151, %v1199
          %v1223 = vadd.f32 %v1152, %v1199
          %v1224 = vadd.f32 %v1153, %v1199
          %v1225 = vadd.f32 %v1154, %v1199
          %v1226 = vadd.f32 %v1155, %v1199
          %v1227 = vadd.f32 %v1156, %v1199
          %v1228 = vadd.f32 %v1157, %v1199
          %v1229 = vadd.f32 %v1158, %v1199
          %v1230 = vadd.f32 %v1159, %v1199
          %v1231 = vadd.f32 %v1160, %v1199
          %v1232 = vadd.f32 %v1161, %v1199
          %v1233 = vadd.f32 %v1162, %v1199
          %v1234 = vadd.f32 %v1163, %v1199
          %v1235 = vadd.f32 %v1164, %v1199
          %v1236 = vadd.f32 %v1165, %v1199
          %v1237 = vadd.f32 %v1166, %v1199
          %v1238 = vadd.f32 %v1167, %v1199
          %v1239 = vadd.f32 %v1168, %v1199
          %v1240 = vadd.f32 %v1169, %v1199
          %v1241 = vadd.f32 %v1170, %v1199
          %v1242 = vadd.f32 %v1171, %v1199
          %v1243 = vadd.f32 %v1172, %v1199
          %v1244 = vadd.f32 %v1173, %v1199
          %v1245 = vadd.f32 %v1174, %v1199
          %v1246 = vadd.f32 %v1175, %v1199
          %v1247 = vadd.f32 %v1176, %v1199
          %v1248 = vadd.f32 %v1177, %v1199
          %v1249 = vadd.f32 %v1178, %v1199
          %v1250 = vadd.f32 %v1179, %v1199
          %v1251 = vadd.f32 %v1180, %v1199
          %v1252 = vadd.f32 %v1181, %v1199
          %v1253 = vadd.f32 %v1182, %v1199
          %v1254 = vadd.f32 %v1183, %v1199
          %v1255 = vadd.f32 %v1184, %v1199
          %v1256 = vadd.f32 %v1185, %v1199
          %v1257 = vadd.f32 %v1186, %v1199
          %v1258 = vadd.f32 %v1187, %v1199
          %v1259 = vadd.f32 %v1188, %v1199
          %v1260 = vadd.f32 %v1189, %v1199
          %v1261 = vadd.f32 %v1190, %v1199
          %v1262 = vadd.f32 %v1191, %v1199
          %v1263 = vadd.f32 %v1192, %v1199
          %v1264 = vadd.f32 %v1193, %v1199
          %v1265 = vpack.c.bf16 %v1202, %v1201
          %v1266 = vpack.c.bf16 %v1204, %v1203
          %v1267 = vpack.c.bf16 %v1206, %v1205
          %v1268 = vpack.c.bf16 %v1208, %v1207
          %v1269 = vpack.c.bf16 %v1210, %v1209
          %v1270 = vpack.c.bf16 %v1212, %v1211
          %v1271 = vpack.c.bf16 %v1214, %v1213
          %v1272 = vpack.c.bf16 %v1216, %v1215
          %v1273 = vpack.c.bf16 %v1218, %v1217
          %v1274 = vpack.c.bf16 %v1220, %v1219
          %v1275 = vpack.c.bf16 %v1222, %v1221
          %v1276 = vpack.c.bf16 %v1224, %v1223
          %v1277 = vpack.c.bf16 %v1226, %v1225
          %v1278 = vpack.c.bf16 %v1228, %v1227
          %v1279 = vpack.c.bf16 %v1230, %v1229
          %v1280 = vpack.c.bf16 %v1232, %v1231
          %v1281 = vpack.c.bf16 %v1234, %v1233
          %v1282 = vpack.c.bf16 %v1236, %v1235
          %v1283 = vpack.c.bf16 %v1238, %v1237
          %v1284 = vpack.c.bf16 %v1240, %v1239
          %v1285 = vpack.c.bf16 %v1242, %v1241
          %v1286 = vpack.c.bf16 %v1244, %v1243
          %v1287 = vpack.c.bf16 %v1246, %v1245
          %v1288 = vpack.c.bf16 %v1248, %v1247
          %v1289 = vpack.c.bf16 %v1250, %v1249
          %v1290 = vpack.c.bf16 %v1252, %v1251
          %v1291 = vpack.c.bf16 %v1254, %v1253
          %v1292 = vpack.c.bf16 %v1256, %v1255
          %v1293 = vpack.c.bf16 %v1258, %v1257
          %v1294 = vpack.c.bf16 %v1260, %v1259
          %v1295 = vpack.c.bf16 %v1262, %v1261
          %v1296 = vpack.c.bf16 %v1264, %v1263
          %v1329 = vunpack.c.l.b16 %v1265
          %v1330 = vunpack.c.h.b16 %v1265
          %v1331 = vunpack.c.l.b16 %v1266
          %v1332 = vunpack.c.h.b16 %v1266
          %v1333 = vunpack.c.l.b16 %v1267
          %v1334 = vunpack.c.h.b16 %v1267
          %v1335 = vunpack.c.l.b16 %v1268
          %v1336 = vunpack.c.h.b16 %v1268
          %v1337 = vunpack.c.l.b16 %v1269
          %v1338 = vunpack.c.h.b16 %v1269
          %v1339 = vunpack.c.l.b16 %v1270
          %v1340 = vunpack.c.h.b16 %v1270
          %v1341 = vunpack.c.l.b16 %v1271
          %v1342 = vunpack.c.h.b16 %v1271
          %v1343 = vunpack.c.l.b16 %v1272
          %v1344 = vunpack.c.h.b16 %v1272
          %v1345 = vunpack.c.l.b16 %v1273
          %v1346 = vunpack.c.h.b16 %v1273
          %v1347 = vunpack.c.l.b16 %v1274
          %v1348 = vunpack.c.h.b16 %v1274
          %v1349 = vunpack.c.l.b16 %v1275
          %v1350 = vunpack.c.h.b16 %v1275
          %v1351 = vunpack.c.l.b16 %v1276
          %v1352 = vunpack.c.h.b16 %v1276
          %v1353 = vunpack.c.l.b16 %v1277
          %v1354 = vunpack.c.h.b16 %v1277
          %v1355 = vunpack.c.l.b16 %v1278
          %v1356 = vunpack.c.h.b16 %v1278
          %v1357 = vunpack.c.l.b16 %v1279
          %v1358 = vunpack.c.h.b16 %v1279
          %v1359 = vunpack.c.l.b16 %v1280
          %v1360 = vunpack.c.h.b16 %v1280
          %v1361 = vunpack.c.l.b16 %v1281
          %v1362 = vunpack.c.h.b16 %v1281
          %v1363 = vunpack.c.l.b16 %v1282
          %v1364 = vunpack.c.h.b16 %v1282
          %v1365 = vunpack.c.l.b16 %v1283
          %v1366 = vunpack.c.h.b16 %v1283
          %v1367 = vunpack.c.l.b16 %v1284
          %v1368 = vunpack.c.h.b16 %v1284
          %v1369 = vunpack.c.l.b16 %v1285
          %v1370 = vunpack.c.h.b16 %v1285
          %v1371 = vunpack.c.l.b16 %v1286
          %v1372 = vunpack.c.h.b16 %v1286
          %v1373 = vunpack.c.l.b16 %v1287
          %v1374 = vunpack.c.h.b16 %v1287
          %v1375 = vunpack.c.l.b16 %v1288
          %v1376 = vunpack.c.h.b16 %v1288
          %v1377 = vunpack.c.l.b16 %v1289
          %v1378 = vunpack.c.h.b16 %v1289
          %v1379 = vunpack.c.l.b16 %v1290
          %v1380 = vunpack.c.h.b16 %v1290
          %v1381 = vunpack.c.l.b16 %v1291
          %v1382 = vunpack.c.h.b16 %v1291
          %v1383 = vunpack.c.l.b16 %v1292
          %v1384 = vunpack.c.h.b16 %v1292
          %v1385 = vunpack.c.l.b16 %v1293
          %v1386 = vunpack.c.h.b16 %v1293
          %v1387 = vunpack.c.l.b16 %v1294
          %v1388 = vunpack.c.h.b16 %v1294
          %v1389 = vunpack.c.l.b16 %v1295
          %v1390 = vunpack.c.h.b16 %v1295
          %v1391 = vunpack.c.l.b16 %v1296
          %v1392 = vunpack.c.h.b16 %v1296
          %v1393 = vpack.c.b16 %v1329, %v1329
          %v1394 = vpack.c.b16 %v1330, %v1330
          %v1395 = vpack.c.b16 %v1331, %v1331
          %v1396 = vpack.c.b16 %v1332, %v1332
          %v1397 = vpack.c.b16 %v1333, %v1333
          %v1398 = vpack.c.b16 %v1334, %v1334
          %v1399 = vpack.c.b16 %v1335, %v1335
          %v1400 = vpack.c.b16 %v1336, %v1336
          %v1401 = vpack.c.b16 %v1337, %v1337
          %v1402 = vpack.c.b16 %v1338, %v1338
          %v1403 = vpack.c.b16 %v1339, %v1339
          %v1404 = vpack.c.b16 %v1340, %v1340
          %v1405 = vpack.c.b16 %v1341, %v1341
          %v1406 = vpack.c.b16 %v1342, %v1342
          %v1407 = vpack.c.b16 %v1343, %v1343
          %v1408 = vpack.c.b16 %v1344, %v1344
          %v1409 = vpack.c.b16 %v1345, %v1345
          %v1410 = vpack.c.b16 %v1346, %v1346
          %v1411 = vpack.c.b16 %v1347, %v1347
          %v1412 = vpack.c.b16 %v1348, %v1348
          %v1413 = vpack.c.b16 %v1349, %v1349
          %v1414 = vpack.c.b16 %v1350, %v1350
          %v1415 = vpack.c.b16 %v1351, %v1351
          %v1416 = vpack.c.b16 %v1352, %v1352
          %v1417 = vpack.c.b16 %v1353, %v1353
          %v1418 = vpack.c.b16 %v1354, %v1354
          %v1419 = vpack.c.b16 %v1355, %v1355
          %v1420 = vpack.c.b16 %v1356, %v1356
          %v1421 = vpack.c.b16 %v1357, %v1357
          %v1422 = vpack.c.b16 %v1358, %v1358
          %v1423 = vpack.c.b16 %v1359, %v1359
          %v1424 = vpack.c.b16 %v1360, %v1360
          %v1425 = vpack.c.b16 %v1361, %v1361
          %v1426 = vpack.c.b16 %v1362, %v1362
          %v1427 = vpack.c.b16 %v1363, %v1363
          %v1428 = vpack.c.b16 %v1364, %v1364
          %v1429 = vpack.c.b16 %v1365, %v1365
          %v1430 = vpack.c.b16 %v1366, %v1366
          %v1431 = vpack.c.b16 %v1367, %v1367
          %v1432 = vpack.c.b16 %v1368, %v1368
          %v1433 = vpack.c.b16 %v1369, %v1369
          %v1434 = vpack.c.b16 %v1370, %v1370
          %v1435 = vpack.c.b16 %v1371, %v1371
          %v1436 = vpack.c.b16 %v1372, %v1372
          %v1437 = vpack.c.b16 %v1373, %v1373
          %v1438 = vpack.c.b16 %v1374, %v1374
          %v1439 = vpack.c.b16 %v1375, %v1375
          %v1440 = vpack.c.b16 %v1376, %v1376
          %v1441 = vpack.c.b16 %v1377, %v1377
          %v1442 = vpack.c.b16 %v1378, %v1378
          %v1443 = vpack.c.b16 %v1379, %v1379
          %v1444 = vpack.c.b16 %v1380, %v1380
          %v1445 = vpack.c.b16 %v1381, %v1381
          %v1446 = vpack.c.b16 %v1382, %v1382
          %v1447 = vpack.c.b16 %v1383, %v1383
          %v1448 = vpack.c.b16 %v1384, %v1384
          %v1449 = vpack.c.b16 %v1385, %v1385
          %v1450 = vpack.c.b16 %v1386, %v1386
          %v1451 = vpack.c.b16 %v1387, %v1387
          %v1452 = vpack.c.b16 %v1388, %v1388
          %v1453 = vpack.c.b16 %v1389, %v1389
          %v1454 = vpack.c.b16 %v1390, %v1390
          %v1455 = vpack.c.b16 %v1391, %v1391
          %v1456 = vpack.c.b16 %v1392, %v1392
          %1521 = vst [vmem:[%s250] sm:$0xf] %v1393
          %1522 = vst [vmem:[%s250 + $0x4] sm:$0xf] %v1394
          %1523 = vst [vmem:[%s250 + $0x8] sm:$0xf] %v1395
          %1524 = vst [vmem:[%s250 + $0xc] sm:$0xf] %v1396
          %1525 = vst [vmem:[%s250 + $0x10] sm:$0xf] %v1397
          %1526 = vst [vmem:[%s250 + $0x14] sm:$0xf] %v1398
          %1527 = vst [vmem:[%s250 + $0x18] sm:$0xf] %v1399
          %1528 = vst [vmem:[%s250 + $0x1c] sm:$0xf] %v1400
          %1529 = vst [vmem:[%s250 + $0x20] sm:$0xf] %v1401
          %1530 = vst [vmem:[%s250 + $0x24] sm:$0xf] %v1402
          %1531 = vst [vmem:[%s250 + $0x28] sm:$0xf] %v1403
          %1532 = vst [vmem:[%s250 + $0x2c] sm:$0xf] %v1404
          %1533 = vst [vmem:[%s250 + $0x30] sm:$0xf] %v1405
          %1534 = vst [vmem:[%s250 + $0x34] sm:$0xf] %v1406
          %1535 = vst [vmem:[%s250 + $0x38] sm:$0xf] %v1407
          %1536 = vst [vmem:[%s250 + $0x3c] sm:$0xf] %v1408
          %1537 = vst [vmem:[%s250 + $0x40] sm:$0xf] %v1409
          %1538 = vst [vmem:[%s250 + $0x44] sm:$0xf] %v1410
          %1539 = vst [vmem:[%s250 + $0x48] sm:$0xf] %v1411
          %1540 = vst [vmem:[%s250 + $0x4c] sm:$0xf] %v1412
          %1541 = vst [vmem:[%s250 + $0x50] sm:$0xf] %v1413
          %1542 = vst [vmem:[%s250 + $0x54] sm:$0xf] %v1414
          %1543 = vst [vmem:[%s250 + $0x58] sm:$0xf] %v1415
          %1544 = vst [vmem:[%s250 + $0x5c] sm:$0xf] %v1416
          %1545 = vst [vmem:[%s250 + $0x60] sm:$0xf] %v1417
          %1546 = vst [vmem:[%s250 + $0x64] sm:$0xf] %v1418
          %1547 = vst [vmem:[%s250 + $0x68] sm:$0xf] %v1419
          %1548 = vst [vmem:[%s250 + $0x6c] sm:$0xf] %v1420
          %1549 = vst [vmem:[%s250 + $0x70] sm:$0xf] %v1421
          %1550 = vst [vmem:[%s250 + $0x74] sm:$0xf] %v1422
          %1551 = vst [vmem:[%s250 + $0x78] sm:$0xf] %v1423
          %1552 = vst [vmem:[%s250 + $0x7c] sm:$0xf] %v1424
          %1553 = vst [vmem:[%s250 + $0x80] sm:$0xf] %v1425
          %1554 = vst [vmem:[%s250 + $0x84] sm:$0xf] %v1426
          %1555 = vst [vmem:[%s250 + $0x88] sm:$0xf] %v1427
          %1556 = vst [vmem:[%s250 + $0x8c] sm:$0xf] %v1428
          %1557 = vst [vmem:[%s250 + $0x90] sm:$0xf] %v1429
          %1558 = vst [vmem:[%s250 + $0x94] sm:$0xf] %v1430
          %1559 = vst [vmem:[%s250 + $0x98] sm:$0xf] %v1431
          %1560 = vst [vmem:[%s250 + $0x9c] sm:$0xf] %v1432
          %1561 = vst [vmem:[%s250 + $0xa0] sm:$0xf] %v1433
          %1562 = vst [vmem:[%s250 + $0xa4] sm:$0xf] %v1434
          %1563 = vst [vmem:[%s250 + $0xa8] sm:$0xf] %v1435
          %1564 = vst [vmem:[%s250 + $0xac] sm:$0xf] %v1436
          %1565 = vst [vmem:[%s250 + $0xb0] sm:$0xf] %v1437
          %1566 = vst [vmem:[%s250 + $0xb4] sm:$0xf] %v1438
          %1567 = vst [vmem:[%s250 + $0xb8] sm:$0xf] %v1439
          %1568 = vst [vmem:[%s250 + $0xbc] sm:$0xf] %v1440
          %1569 = vst [vmem:[%s250 + $0xc0] sm:$0xf] %v1441
          %1570 = vst [vmem:[%s250 + $0xc4] sm:$0xf] %v1442
          %1571 = vst [vmem:[%s250 + $0xc8] sm:$0xf] %v1443
          %1572 = vst [vmem:[%s250 + $0xcc] sm:$0xf] %v1444
          %1573 = vst [vmem:[%s250 + $0xd0] sm:$0xf] %v1445
          %1574 = vst [vmem:[%s250 + $0xd4] sm:$0xf] %v1446
          %1575 = vst [vmem:[%s250 + $0xd8] sm:$0xf] %v1447
          %1576 = vst [vmem:[%s250 + $0xdc] sm:$0xf] %v1448
          %1577 = vst [vmem:[%s250 + $0xe0] sm:$0xf] %v1449
          %1578 = vst [vmem:[%s250 + $0xe4] sm:$0xf] %v1450
          %1579 = vst [vmem:[%s250 + $0xe8] sm:$0xf] %v1451
          %1580 = vst [vmem:[%s250 + $0xec] sm:$0xf] %v1452
          %1581 = vst [vmem:[%s250 + $0xf0] sm:$0xf] %v1453
          %1582 = vst [vmem:[%s250 + $0xf4] sm:$0xf] %v1454
          %1583 = vst [vmem:[%s250 + $0xf8] sm:$0xf] %v1455
          %1584 = vst [vmem:[%s250 + $0xfc] sm:$0xf] %v1456
        $region48: #{tpu_custom_call.1} parent=31 // pred_fallthru
          _
        %s1585 = sand.u32 %s132, 1
        %s1586 = scalar_lea.sflag [#allocation5], %s1585
        %s1587 = sand.u32 %s132, 1
        %s1588 = smul.addr %s1587, 256
        %s1589 = scalar_lea.vmem [#allocation8], %s1588
        // Predicated region
        $region49: #{tpu_custom_call.1} parent=31 // pred_check
          %p1590 = pneg %p142
        $region50: #{tpu_custom_call.1} parent=31 // pred_check_branch
          %1592 = sbr.rel (%p1590) target = $region52
        $region51: #{tpu_custom_call.1} parent=31 // pred_region
          %s1593 = smul.u32 64, %s26
          %s1595 = ssub.s32 4096, 4096
          %1596 = vsyncadd %s1586, %s1595
          %s1597 = smul.addr %s1593, 3
          %s1598 = sadd.s32 %s27, %s1597
          %s1599 = smul.addr %s1598, 64
          %s1600 = scalar_lea.hbm %s3, %s1599
          %s1601 = sshll.u32 %s1589, 4
          %s1602 = int_to_ptr.vmem [resolvable:$true] %s1601
          %1607 = dma.vmem_to_hbm [thread:$0]  %s1602, 4096, %s1600, %s1586, 64, 192, 4
        $region52: #{tpu_custom_call.1} parent=31 // pred_fallthru
          _
      $region32: #{tpu_custom_call.1} parent=5 // pred_fallthru
        _
      %p1608 = scmp.le.s32.totalorder 2, %s16
      // Predicated region
      $region53: #{tpu_custom_call.1} parent=5 // pred_check
        %p1609 = pneg %p1608
      $region54: #{tpu_custom_call.1} parent=5 // pred_check_branch
        %1611 = sbr.rel (%p1609) target = $region56
      $region55: #{tpu_custom_call.1} parent=5 // pred_region
        %s1612 = ssub.s32 %s16, 2
        // Predicated region
        $region57: #{tpu_custom_call.1} parent=55 // pred_check
          %p1613 = pneg %p148
        $region58: #{tpu_custom_call.1} parent=55 // pred_check_branch
          %1615 = sbr.rel (%p1613) target = $region60
        $region59: #{tpu_custom_call.1} parent=55 // pred_region
          %s1616 = sand.u32 %s133, 1
          %s1617 = scalar_lea.sflag [#allocation5], %s1616
          %s1618 = sand.u32 %s133, 1
          %s1619 = smul.addr %s1618, 256
          %s1620 = scalar_lea.vmem [#allocation8], %s1619
          %1621 = dma.done %s1617, 4096
        $region60: #{tpu_custom_call.1} parent=55 // pred_fallthru
          _
      $region56: #{tpu_custom_call.1} parent=5 // pred_fallthru
        _
    $region6: #{tpu_custom_call.1} parent=1 // loop_footer
      %s20 = sadd.s32 1, %s16
    $region7: #{tpu_custom_call.1} parent=1 // loop_footer_branch
      %15 = sbr.rel target = $region3
    $region8: #{tpu_custom_call.1} parent=1 // loop_exit
      _
    %1622 = vsyncpa [#allocation4], 1
    %s1623 = scalar_lea.sflag [#allocation4], 1
    %1624 = vsyncpa %s1623, 1
    %1625 = vsyncpa [#allocation7], 1
    %s1626 = scalar_lea.sflag [#allocation7], 1
    %1627 = vsyncpa %s1626, 1
    %1628 = vsyncpa [#allocation5], 1
    %s1629 = scalar_lea.sflag [#allocation5], 1
    %1630 = vsyncpa %s1629, 1

</llo_original>
